<compile_context>
chip_gen: v7x
topology: tpu7x:2x2x1
jax: 0.10.0
libtpu: 0.0.40
codegen_flags: <defaults>
</compile_context>

<pallas_src>
import functools

import jax
import jax.numpy as jnp
from jax.experimental import pallas as pl
from jax.experimental.pallas import tpu as pltpu


def _mha_kernel(xcat_ref, wqkv_ref, wfc_ref, bfc_ref, gamma_ref, beta_ref,
                out_ref, *, n_head, d_k, d_v, d_model, ln_eps):
    # Block shapes:
    #   xcat_ref : (bb, L, 3*D)   -- [q | k | v] along the feature axis
    #   wqkv_ref : (3*D, 2*H*dk + H*dv)  block-diagonal fused QKV weight
    #   wfc_ref  : (H, d_v, D)    -- output projection pre-split per head
    #   bfc/gamma/beta : (1, D)
    #   out_ref  : (bb, L, D)
    bb, L, _ = xcat_ref.shape
    M = bb * L

    xcat = xcat_ref[...]                              # (bb, L, 3D)
    residual = xcat[:, :, :d_model]                   # q part -> residual
    x2 = xcat.reshape(M, 3 * d_model)                 # leading-dim merge (layout no-op)

    # --- fused QKV projection: a single MXU push (1/temperature folded into Q) ---
    qkv = jnp.dot(x2, wqkv_ref[...], preferred_element_type=jnp.float32)  # (M, 2*H*dk + H*dv)

    hdk = n_head * d_k
    o = jnp.zeros((bb, L, d_model), jnp.float32)

    # --- per-head attention, accumulated straight through the output projection ---
    for h in range(n_head):                           # static unroll; only `o` stays live
        qh = qkv[:, h * d_k:(h + 1) * d_k].reshape(bb, L, d_k)
        kh = qkv[:, hdk + h * d_k: hdk + (h + 1) * d_k].reshape(bb, L, d_k)
        vh = qkv[:, 2 * hdk + h * d_v: 2 * hdk + (h + 1) * d_v].reshape(bb, L, d_v)

        s = jnp.einsum('bqd,bkd->bqk', qh, kh,
                       preferred_element_type=jnp.float32)        # (bb, L, L), already /temp
        s = s - jnp.max(s, axis=-1, keepdims=True)                 # stable softmax
        p = jnp.exp(s)
        p = p * pl.reciprocal(jnp.sum(p, axis=-1, keepdims=True), approx=False)

        oh = jnp.einsum('bqk,bkd->bqd', p, vh,
                        preferred_element_type=jnp.float32)        # (bb, L, d_v)
        # sum_h O_h @ Wfc_h  ==  concat_h(O_h) @ Wfc   (no concatenate needed)
        o = o + jnp.dot(oh.reshape(M, d_v), wfc_ref[h],
                        preferred_element_type=jnp.float32).reshape(bb, L, d_model)

    # --- bias + residual + LayerNorm ---
    x = o + bfc_ref[...] + residual
    mean = jnp.mean(x, axis=-1, keepdims=True)
    var = jnp.mean((x - mean) ** 2, axis=-1, keepdims=True)
    y = (x - mean) * jax.lax.rsqrt(var + ln_eps)
    y = y * gamma_ref[...] + beta_ref[...]
    out_ref[...] = y.astype(out_ref.dtype)


def multi_head_attention(q, k, v, params, *, n_head, d_k, d_v, num_blocks=None):
    B, L, D = q.shape
    wq, wk, wv, wfc, bfc, gamma, beta = params
    temperature = float(d_k) ** 0.5

    if num_blocks is None:
        # >=2 grid steps when possible so both v7x TensorCores get work;
        # on v5e/v6e use num_blocks=1 to amortise per-step pipeline overhead.
        num_blocks = 2 if (B >= 2 and B % 2 == 0) else 1
    assert B % num_blocks == 0
    bb = B // num_blocks

    n_q = n_head * d_k
    n_v = n_head * d_v
    n_tot = 2 * n_q + n_v

    # Fused block-diagonal QKV weight (1/temperature folded into the Q block).
    w_qkv = jnp.zeros((3 * D, n_tot), q.dtype)
    w_qkv = w_qkv.at[0:D, 0:n_q].set(wq / temperature)
    w_qkv = w_qkv.at[D:2 * D, n_q:2 * n_q].set(wk)
    w_qkv = w_qkv.at[2 * D:3 * D, 2 * n_q:].set(wv)

    # Output projection pre-split per head (leading-dim indexable in-kernel).
    wfc_h = wfc.reshape(n_head, d_v, D)

    # Single activation slab: [q | k | v] along the feature axis.
    x_cat = jnp.concatenate([q, k, v], axis=-1)       # (B, L, 3D)

    kernel = functools.partial(
        _mha_kernel, n_head=n_head, d_k=d_k, d_v=d_v, d_model=D, ln_eps=1e-5)

    return pl.pallas_call(
        kernel,
        out_shape=jax.ShapeDtypeStruct((B, L, D), q.dtype),
        grid_spec=pltpu.PrefetchScalarGridSpec(
            num_scalar_prefetch=0,
            grid=(num_blocks,),
            in_specs=[
                pl.BlockSpec((bb, L, 3 * D), lambda b: (b, 0, 0)),
                pl.BlockSpec((3 * D, n_tot), lambda b: (0, 0)),
                pl.BlockSpec((n_head, d_v, D), lambda b: (0, 0, 0)),
                pl.BlockSpec((1, D), lambda b: (0, 0)),
                pl.BlockSpec((1, D), lambda b: (0, 0)),
                pl.BlockSpec((1, D), lambda b: (0, 0)),
            ],
            out_specs=pl.BlockSpec((bb, L, D), lambda b: (b, 0, 0)),
        ),
        compiler_params=pltpu.CompilerParams(
            dimension_semantics=("parallel",),
            vmem_limit_bytes=32 * 1024 * 1024,   # explicit budget, safe on v5e/v6e/v7x
        ),
    )(x_cat, w_qkv, wfc_h, bfc, gamma, beta)


def _reference(q, k, v, params, *, n_head, d_k, d_v):
    """Pure-JAX reference mirroring the PyTorch forward exactly."""
    wq, wk, wv, wfc, bfc, gamma, beta = params
    B, Lq, D = q.shape
    temperature = float(d_k) ** 0.5
    residual = q
    Q = (q @ wq).reshape(B, Lq, n_head, d_k)
    K = (k @ wk).reshape(B, Lq, n_head, d_k)
    V = (v @ wv).reshape(B, Lq, n_head, d_v)
    Q = jnp.transpose(Q, (2, 0, 1, 3)).reshape(-1, Lq, d_k)
    K = jnp.transpose(K, (2, 0, 1, 3)).reshape(-1, Lq, d_k)
    V = jnp.transpose(V, (2, 0, 1, 3)).reshape(-1, Lq, d_v)
    attn = jnp.einsum('bqd,bkd->bqk', Q, K) / temperature
    attn = jax.nn.softmax(attn, axis=2)
    out = jnp.einsum('bqk,bkd->bqd', attn, V)
    out = out.reshape(n_head, B, Lq, d_v)
    out = jnp.transpose(out, (1, 2, 0, 3)).reshape(B, Lq, -1)
    out = out @ wfc + bfc[0]
    x = out + residual
    mean = jnp.mean(x, axis=-1, keepdims=True)
    var = jnp.mean((x - mean) ** 2, axis=-1, keepdims=True)
    return (x - mean) * jax.lax.rsqrt(var + 1e-5) * gamma[0] + beta[0]


if __name__ == "__main__":
    # Small shapes consistent with the module.
    n_head, d_model, d_k, d_v = 4, 32, 8, 8
    sz_b, seq_len = 2, 8

    key = jax.random.PRNGKey(0)
    k_q, k_k, k_v, k_wq, k_wk, k_wv, k_fc, k_bfc = jax.random.split(key, 8)

    q = jax.random.normal(k_q, (sz_b, seq_len, d_model), jnp.float32)
    k = jax.random.normal(k_k, (sz_b, seq_len, d_model), jnp.float32)
    v = jax.random.normal(k_v, (sz_b, seq_len, d_model), jnp.float32)

    # Deterministic parameter init (shapes match nn.Linear(in, out).weight.T).
    std_qk = (2.0 / (d_model + d_k)) ** 0.5
    std_v = (2.0 / (d_model + d_v)) ** 0.5
    wq = std_qk * jax.random.normal(k_wq, (d_model, n_head * d_k), jnp.float32)
    wk = std_qk * jax.random.normal(k_wk, (d_model, n_head * d_k), jnp.float32)
    wv = std_v * jax.random.normal(k_wv, (d_model, n_head * d_v), jnp.float32)
    xavier_std = (2.0 / (n_head * d_v + d_model)) ** 0.5
    wfc = xavier_std * jax.random.normal(k_fc, (n_head * d_v, d_model), jnp.float32)
    bound = 1.0 / (n_head * d_v) ** 0.5
    bfc = jax.random.uniform(k_bfc, (1, d_model), jnp.float32, -bound, bound)
    gamma = jnp.ones((1, d_model), jnp.float32)   # LayerNorm weight init
    beta = jnp.zeros((1, d_model), jnp.float32)   # LayerNorm bias init

    params = (wq, wk, wv, wfc, bfc, gamma, beta)

    out = multi_head_attention(q, k, v, params, n_head=n_head, d_k=d_k, d_v=d_v)
    out = jax.block_until_ready(out)

    ref = _reference(q, k, v, params, n_head=n_head, d_k=d_k, d_v=d_v)
    assert out.shape == (sz_b, seq_len, d_model)
    assert jnp.allclose(out, ref, atol=1e-4, rtol=1e-4), "mismatch vs pure-JAX reference"

    print("KERNEL_OK")
</pallas_src>

<mosaic_0001>
module attributes {stable_mosaic.version = 11 : i64} {
  func.func @_mha_kernel(%arg0: i32, %arg1: memref<1x8x96xf32, #tpu.memory_space<vmem>>, %arg2: memref<96x96xf32, #tpu.memory_space<vmem>>, %arg3: memref<4x8x32xf32, #tpu.memory_space<vmem>>, %arg4: memref<1x32xf32, #tpu.memory_space<vmem>>, %arg5: memref<1x32xf32, #tpu.memory_space<vmem>>, %arg6: memref<1x32xf32, #tpu.memory_space<vmem>>, %arg7: memref<1x8x32xf32, #tpu.memory_space<vmem>>) attributes {dimension_semantics = [#tpu.dimension_semantics<parallel>], iteration_bounds = array<i64: 2>, scalar_prefetch = 0 : i64, scratch_operands = 0 : i64, tpu.core_type = #tpu.core_type<tc>, window_params = [{transform_indices = @transform_0, window_bounds = array<i64: 1, 8, 96>}, {pipeline_mode = #tpu.pipeline_mode<synchronous>, transform_indices = @transform_1, window_bounds = array<i64: 96, 96>}, {pipeline_mode = #tpu.pipeline_mode<synchronous>, transform_indices = @transform_2, window_bounds = array<i64: 4, 8, 32>}, {pipeline_mode = #tpu.pipeline_mode<synchronous>, transform_indices = @transform_3, window_bounds = array<i64: 1, 32>}, {pipeline_mode = #tpu.pipeline_mode<synchronous>, transform_indices = @transform_4, window_bounds = array<i64: 1, 32>}, {pipeline_mode = #tpu.pipeline_mode<synchronous>, transform_indices = @transform_5, window_bounds = array<i64: 1, 32>}, {transform_indices = @transform_6, window_bounds = array<i64: 1, 8, 32>}]} {
    %c0 = arith.constant 0 : index
    %c0_0 = arith.constant 0 : index
    %c0_1 = arith.constant 0 : index
    %0 = vector.load %arg1[%c0, %c0_0, %c0_1] : memref<1x8x96xf32, #tpu.memory_space<vmem>>, vector<1x8x96xf32>
    %1 = vector.extract_strided_slice %0 {offsets = [0, 0, 0], sizes = [1, 8, 32], strides = [1, 1, 1]} : vector<1x8x96xf32> to vector<1x8x32xf32>
    %2 = vector.shape_cast %0 : vector<1x8x96xf32> to vector<8x96xf32>
    %c0_2 = arith.constant 0 : index
    %c0_3 = arith.constant 0 : index
    %3 = vector.load %arg2[%c0_2, %c0_3] : memref<96x96xf32, #tpu.memory_space<vmem>>, vector<96x96xf32>
    %cst = arith.constant dense<0.000000e+00> : vector<8x96xf32>
    %4 = tpu.matmul %2, %3, %cst {dimension_numbers = #tpu.dot_dimension_numbers<[1], [0], [0], [1], [0, 0, 1, 1], [], []>} : vector<8x96xf32>, vector<96x96xf32>, vector<8x96xf32> -> vector<8x96xf32>
    %cst_4 = arith.constant 0.000000e+00 : f32
    %5 = vector.broadcast %cst_4 : f32 to vector<1x8x32xf32>
    %6 = vector.extract_strided_slice %4 {offsets = [0, 0], sizes = [8, 8], strides = [1, 1]} : vector<8x96xf32> to vector<8x8xf32>
    %7 = vector.shape_cast %6 : vector<8x8xf32> to vector<1x8x8xf32>
    %8 = vector.extract_strided_slice %4 {offsets = [0, 32], sizes = [8, 8], strides = [1, 1]} : vector<8x96xf32> to vector<8x8xf32>
    %9 = vector.shape_cast %8 : vector<8x8xf32> to vector<1x8x8xf32>
    %10 = vector.extract_strided_slice %4 {offsets = [0, 64], sizes = [8, 8], strides = [1, 1]} : vector<8x96xf32> to vector<8x8xf32>
    %11 = vector.shape_cast %10 : vector<8x8xf32> to vector<1x8x8xf32>
    "tpu.trace_start"() <{level = 10 : i32, message = "bqd,bkd->bqk"}> : () -> ()
    %cst_5 = arith.constant dense<0.000000e+00> : vector<1x8x8xf32>
    %12 = tpu.matmul %7, %9, %cst_5 {dimension_numbers = #tpu.dot_dimension_numbers<[2], [2], [1], [1], [0, 0, 0, 1, 1, 1], [0], [0]>} : vector<1x8x8xf32>, vector<1x8x8xf32>, vector<1x8x8xf32> -> vector<1x8x8xf32>
    "tpu.trace_stop"() : () -> ()
    %cst_6 = arith.constant dense<0xFF800000> : vector<1x8xf32>
    %13 = vector.multi_reduction <maximumf>, %12, %cst_6 [2] : vector<1x8x8xf32> to vector<1x8xf32>
    %14 = vector.shape_cast %13 : vector<1x8xf32> to vector<1x8x1xf32>
    %15 = vector.broadcast %14 : vector<1x8x1xf32> to vector<1x8x8xf32>
    %16 = arith.subf %12, %15 : vector<1x8x8xf32>
    %17 = math.exp %16 : vector<1x8x8xf32>
    %cst_7 = arith.constant dense<0.000000e+00> : vector<1x8xf32>
    %18 = vector.multi_reduction <add>, %17, %cst_7 [2] : vector<1x8x8xf32> to vector<1x8xf32>
    %19 = vector.shape_cast %18 : vector<1x8xf32> to vector<1x8x1xf32>
    %20 = tpu.reciprocal %19 : vector<1x8x1xf32> -> vector<1x8x1xf32>
    %21 = vector.broadcast %20 : vector<1x8x1xf32> to vector<1x8x8xf32>
    %22 = arith.mulf %17, %21 : vector<1x8x8xf32>
    "tpu.trace_start"() <{level = 10 : i32, message = "bqk,bkd->bqd"}> : () -> ()
    %cst_8 = arith.constant dense<0.000000e+00> : vector<1x8x8xf32>
    %23 = tpu.matmul %22, %11, %cst_8 {dimension_numbers = #tpu.dot_dimension_numbers<[2], [1], [1], [2], [0, 0, 0, 1, 1, 2], [0], [0]>} : vector<1x8x8xf32>, vector<1x8x8xf32>, vector<1x8x8xf32> -> vector<1x8x8xf32>
    "tpu.trace_stop"() : () -> ()
    %24 = vector.shape_cast %23 : vector<1x8x8xf32> to vector<8x8xf32>
    %c0_9 = arith.constant 0 : index
    %c0_10 = arith.constant 0 : index
    %c0_11 = arith.constant 0 : index
    %25 = vector.load %arg3[%c0_9, %c0_10, %c0_11] : memref<4x8x32xf32, #tpu.memory_space<vmem>>, vector<1x8x32xf32>
    %26 = vector.shape_cast %25 : vector<1x8x32xf32> to vector<8x32xf32>
    %cst_12 = arith.constant dense<0.000000e+00> : vector<8x32xf32>
    %27 = tpu.matmul %24, %26, %cst_12 {dimension_numbers = #tpu.dot_dimension_numbers<[1], [0], [0], [1], [0, 0, 1, 1], [], []>} : vector<8x8xf32>, vector<8x32xf32>, vector<8x32xf32> -> vector<8x32xf32>
    %28 = vector.shape_cast %27 : vector<8x32xf32> to vector<1x8x32xf32>
    %29 = arith.addf %5, %28 : vector<1x8x32xf32>
    %30 = vector.extract_strided_slice %4 {offsets = [0, 8], sizes = [8, 8], strides = [1, 1]} : vector<8x96xf32> to vector<8x8xf32>
    %31 = vector.shape_cast %30 : vector<8x8xf32> to vector<1x8x8xf32>
    %32 = vector.extract_strided_slice %4 {offsets = [0, 40], sizes = [8, 8], strides = [1, 1]} : vector<8x96xf32> to vector<8x8xf32>
    %33 = vector.shape_cast %32 : vector<8x8xf32> to vector<1x8x8xf32>
    %34 = vector.extract_strided_slice %4 {offsets = [0, 72], sizes = [8, 8], strides = [1, 1]} : vector<8x96xf32> to vector<8x8xf32>
    %35 = vector.shape_cast %34 : vector<8x8xf32> to vector<1x8x8xf32>
    "tpu.trace_start"() <{level = 10 : i32, message = "bqd,bkd->bqk"}> : () -> ()
    %cst_13 = arith.constant dense<0.000000e+00> : vector<1x8x8xf32>
    %36 = tpu.matmul %31, %33, %cst_13 {dimension_numbers = #tpu.dot_dimension_numbers<[2], [2], [1], [1], [0, 0, 0, 1, 1, 1], [0], [0]>} : vector<1x8x8xf32>, vector<1x8x8xf32>, vector<1x8x8xf32> -> vector<1x8x8xf32>
    "tpu.trace_stop"() : () -> ()
    %cst_14 = arith.constant dense<0xFF800000> : vector<1x8xf32>
    %37 = vector.multi_reduction <maximumf>, %36, %cst_14 [2] : vector<1x8x8xf32> to vector<1x8xf32>
    %38 = vector.shape_cast %37 : vector<1x8xf32> to vector<1x8x1xf32>
    %39 = vector.broadcast %38 : vector<1x8x1xf32> to vector<1x8x8xf32>
    %40 = arith.subf %36, %39 : vector<1x8x8xf32>
    %41 = math.exp %40 : vector<1x8x8xf32>
    %cst_15 = arith.constant dense<0.000000e+00> : vector<1x8xf32>
    %42 = vector.multi_reduction <add>, %41, %cst_15 [2] : vector<1x8x8xf32> to vector<1x8xf32>
    %43 = vector.shape_cast %42 : vector<1x8xf32> to vector<1x8x1xf32>
    %44 = tpu.reciprocal %43 : vector<1x8x1xf32> -> vector<1x8x1xf32>
    %45 = vector.broadcast %44 : vector<1x8x1xf32> to vector<1x8x8xf32>
    %46 = arith.mulf %41, %45 : vector<1x8x8xf32>
    "tpu.trace_start"() <{level = 10 : i32, message = "bqk,bkd->bqd"}> : () -> ()
    %cst_16 = arith.constant dense<0.000000e+00> : vector<1x8x8xf32>
    %47 = tpu.matmul %46, %35, %cst_16 {dimension_numbers = #tpu.dot_dimension_numbers<[2], [1], [1], [2], [0, 0, 0, 1, 1, 2], [0], [0]>} : vector<1x8x8xf32>, vector<1x8x8xf32>, vector<1x8x8xf32> -> vector<1x8x8xf32>
    "tpu.trace_stop"() : () -> ()
    %48 = vector.shape_cast %47 : vector<1x8x8xf32> to vector<8x8xf32>
    %c1 = arith.constant 1 : index
    %c0_17 = arith.constant 0 : index
    %c0_18 = arith.constant 0 : index
    %49 = vector.load %arg3[%c1, %c0_17, %c0_18] : memref<4x8x32xf32, #tpu.memory_space<vmem>>, vector<1x8x32xf32>
    %50 = vector.shape_cast %49 : vector<1x8x32xf32> to vector<8x32xf32>
    %cst_19 = arith.constant dense<0.000000e+00> : vector<8x32xf32>
    %51 = tpu.matmul %48, %50, %cst_19 {dimension_numbers = #tpu.dot_dimension_numbers<[1], [0], [0], [1], [0, 0, 1, 1], [], []>} : vector<8x8xf32>, vector<8x32xf32>, vector<8x32xf32> -> vector<8x32xf32>
    %52 = vector.shape_cast %51 : vector<8x32xf32> to vector<1x8x32xf32>
    %53 = arith.addf %29, %52 : vector<1x8x32xf32>
    %54 = vector.extract_strided_slice %4 {offsets = [0, 16], sizes = [8, 8], strides = [1, 1]} : vector<8x96xf32> to vector<8x8xf32>
    %55 = vector.shape_cast %54 : vector<8x8xf32> to vector<1x8x8xf32>
    %56 = vector.extract_strided_slice %4 {offsets = [0, 48], sizes = [8, 8], strides = [1, 1]} : vector<8x96xf32> to vector<8x8xf32>
    %57 = vector.shape_cast %56 : vector<8x8xf32> to vector<1x8x8xf32>
    %58 = vector.extract_strided_slice %4 {offsets = [0, 80], sizes = [8, 8], strides = [1, 1]} : vector<8x96xf32> to vector<8x8xf32>
    %59 = vector.shape_cast %58 : vector<8x8xf32> to vector<1x8x8xf32>
    "tpu.trace_start"() <{level = 10 : i32, message = "bqd,bkd->bqk"}> : () -> ()
    %cst_20 = arith.constant dense<0.000000e+00> : vector<1x8x8xf32>
    %60 = tpu.matmul %55, %57, %cst_20 {dimension_numbers = #tpu.dot_dimension_numbers<[2], [2], [1], [1], [0, 0, 0, 1, 1, 1], [0], [0]>} : vector<1x8x8xf32>, vector<1x8x8xf32>, vector<1x8x8xf32> -> vector<1x8x8xf32>
    "tpu.trace_stop"() : () -> ()
    %cst_21 = arith.constant dense<0xFF800000> : vector<1x8xf32>
    %61 = vector.multi_reduction <maximumf>, %60, %cst_21 [2] : vector<1x8x8xf32> to vector<1x8xf32>
    %62 = vector.shape_cast %61 : vector<1x8xf32> to vector<1x8x1xf32>
    %63 = vector.broadcast %62 : vector<1x8x1xf32> to vector<1x8x8xf32>
    %64 = arith.subf %60, %63 : vector<1x8x8xf32>
    %65 = math.exp %64 : vector<1x8x8xf32>
    %cst_22 = arith.constant dense<0.000000e+00> : vector<1x8xf32>
    %66 = vector.multi_reduction <add>, %65, %cst_22 [2] : vector<1x8x8xf32> to vector<1x8xf32>
    %67 = vector.shape_cast %66 : vector<1x8xf32> to vector<1x8x1xf32>
    %68 = tpu.reciprocal %67 : vector<1x8x1xf32> -> vector<1x8x1xf32>
    %69 = vector.broadcast %68 : vector<1x8x1xf32> to vector<1x8x8xf32>
    %70 = arith.mulf %65, %69 : vector<1x8x8xf32>
    "tpu.trace_start"() <{level = 10 : i32, message = "bqk,bkd->bqd"}> : () -> ()
    %cst_23 = arith.constant dense<0.000000e+00> : vector<1x8x8xf32>
    %71 = tpu.matmul %70, %59, %cst_23 {dimension_numbers = #tpu.dot_dimension_numbers<[2], [1], [1], [2], [0, 0, 0, 1, 1, 2], [0], [0]>} : vector<1x8x8xf32>, vector<1x8x8xf32>, vector<1x8x8xf32> -> vector<1x8x8xf32>
    "tpu.trace_stop"() : () -> ()
    %72 = vector.shape_cast %71 : vector<1x8x8xf32> to vector<8x8xf32>
    %c2 = arith.constant 2 : index
    %c0_24 = arith.constant 0 : index
    %c0_25 = arith.constant 0 : index
    %73 = vector.load %arg3[%c2, %c0_24, %c0_25] : memref<4x8x32xf32, #tpu.memory_space<vmem>>, vector<1x8x32xf32>
    %74 = vector.shape_cast %73 : vector<1x8x32xf32> to vector<8x32xf32>
    %cst_26 = arith.constant dense<0.000000e+00> : vector<8x32xf32>
    %75 = tpu.matmul %72, %74, %cst_26 {dimension_numbers = #tpu.dot_dimension_numbers<[1], [0], [0], [1], [0, 0, 1, 1], [], []>} : vector<8x8xf32>, vector<8x32xf32>, vector<8x32xf32> -> vector<8x32xf32>
    %76 = vector.shape_cast %75 : vector<8x32xf32> to vector<1x8x32xf32>
    %77 = arith.addf %53, %76 : vector<1x8x32xf32>
    %78 = vector.extract_strided_slice %4 {offsets = [0, 24], sizes = [8, 8], strides = [1, 1]} : vector<8x96xf32> to vector<8x8xf32>
    %79 = vector.shape_cast %78 : vector<8x8xf32> to vector<1x8x8xf32>
    %80 = vector.extract_strided_slice %4 {offsets = [0, 56], sizes = [8, 8], strides = [1, 1]} : vector<8x96xf32> to vector<8x8xf32>
    %81 = vector.shape_cast %80 : vector<8x8xf32> to vector<1x8x8xf32>
    %82 = vector.extract_strided_slice %4 {offsets = [0, 88], sizes = [8, 8], strides = [1, 1]} : vector<8x96xf32> to vector<8x8xf32>
    %83 = vector.shape_cast %82 : vector<8x8xf32> to vector<1x8x8xf32>
    "tpu.trace_start"() <{level = 10 : i32, message = "bqd,bkd->bqk"}> : () -> ()
    %cst_27 = arith.constant dense<0.000000e+00> : vector<1x8x8xf32>
    %84 = tpu.matmul %79, %81, %cst_27 {dimension_numbers = #tpu.dot_dimension_numbers<[2], [2], [1], [1], [0, 0, 0, 1, 1, 1], [0], [0]>} : vector<1x8x8xf32>, vector<1x8x8xf32>, vector<1x8x8xf32> -> vector<1x8x8xf32>
    "tpu.trace_stop"() : () -> ()
    %cst_28 = arith.constant dense<0xFF800000> : vector<1x8xf32>
    %85 = vector.multi_reduction <maximumf>, %84, %cst_28 [2] : vector<1x8x8xf32> to vector<1x8xf32>
    %86 = vector.shape_cast %85 : vector<1x8xf32> to vector<1x8x1xf32>
    %87 = vector.broadcast %86 : vector<1x8x1xf32> to vector<1x8x8xf32>
    %88 = arith.subf %84, %87 : vector<1x8x8xf32>
    %89 = math.exp %88 : vector<1x8x8xf32>
    %cst_29 = arith.constant dense<0.000000e+00> : vector<1x8xf32>
    %90 = vector.multi_reduction <add>, %89, %cst_29 [2] : vector<1x8x8xf32> to vector<1x8xf32>
    %91 = vector.shape_cast %90 : vector<1x8xf32> to vector<1x8x1xf32>
    %92 = tpu.reciprocal %91 : vector<1x8x1xf32> -> vector<1x8x1xf32>
    %93 = vector.broadcast %92 : vector<1x8x1xf32> to vector<1x8x8xf32>
    %94 = arith.mulf %89, %93 : vector<1x8x8xf32>
    "tpu.trace_start"() <{level = 10 : i32, message = "bqk,bkd->bqd"}> : () -> ()
    %cst_30 = arith.constant dense<0.000000e+00> : vector<1x8x8xf32>
    %95 = tpu.matmul %94, %83, %cst_30 {dimension_numbers = #tpu.dot_dimension_numbers<[2], [1], [1], [2], [0, 0, 0, 1, 1, 2], [0], [0]>} : vector<1x8x8xf32>, vector<1x8x8xf32>, vector<1x8x8xf32> -> vector<1x8x8xf32>
    "tpu.trace_stop"() : () -> ()
    %96 = vector.shape_cast %95 : vector<1x8x8xf32> to vector<8x8xf32>
    %c3 = arith.constant 3 : index
    %c0_31 = arith.constant 0 : index
    %c0_32 = arith.constant 0 : index
    %97 = vector.load %arg3[%c3, %c0_31, %c0_32] : memref<4x8x32xf32, #tpu.memory_space<vmem>>, vector<1x8x32xf32>
    %98 = vector.shape_cast %97 : vector<1x8x32xf32> to vector<8x32xf32>
    %cst_33 = arith.constant dense<0.000000e+00> : vector<8x32xf32>
    %99 = tpu.matmul %96, %98, %cst_33 {dimension_numbers = #tpu.dot_dimension_numbers<[1], [0], [0], [1], [0, 0, 1, 1], [], []>} : vector<8x8xf32>, vector<8x32xf32>, vector<8x32xf32> -> vector<8x32xf32>
    %100 = vector.shape_cast %99 : vector<8x32xf32> to vector<1x8x32xf32>
    %101 = arith.addf %77, %100 : vector<1x8x32xf32>
    %c0_34 = arith.constant 0 : index
    %c0_35 = arith.constant 0 : index
    %102 = vector.load %arg4[%c0_34, %c0_35] : memref<1x32xf32, #tpu.memory_space<vmem>>, vector<1x32xf32>
    %103 = vector.shape_cast %102 : vector<1x32xf32> to vector<1x1x32xf32>
    %104 = vector.broadcast %103 : vector<1x1x32xf32> to vector<1x8x32xf32>
    %105 = arith.addf %101, %104 : vector<1x8x32xf32>
    %106 = arith.addf %105, %1 : vector<1x8x32xf32>
    %cst_36 = arith.constant dense<0.000000e+00> : vector<1x8xf32>
    %107 = vector.multi_reduction <add>, %106, %cst_36 [2] : vector<1x8x32xf32> to vector<1x8xf32>
    %108 = vector.shape_cast %107 : vector<1x8xf32> to vector<1x8x1xf32>
    %cst_37 = arith.constant 3.200000e+01 : f32
    %109 = vector.broadcast %cst_37 : f32 to vector<1x8x1xf32>
    %110 = arith.divf %108, %109 : vector<1x8x1xf32>
    %111 = vector.broadcast %110 : vector<1x8x1xf32> to vector<1x8x32xf32>
    %112 = arith.subf %106, %111 : vector<1x8x32xf32>
    %113 = arith.mulf %112, %112 : vector<1x8x32xf32>
    %cst_38 = arith.constant dense<0.000000e+00> : vector<1x8xf32>
    %114 = vector.multi_reduction <add>, %113, %cst_38 [2] : vector<1x8x32xf32> to vector<1x8xf32>
    %115 = vector.shape_cast %114 : vector<1x8xf32> to vector<1x8x1xf32>
    %cst_39 = arith.constant 3.200000e+01 : f32
    %116 = vector.broadcast %cst_39 : f32 to vector<1x8x1xf32>
    %117 = arith.divf %115, %116 : vector<1x8x1xf32>
    %118 = vector.broadcast %110 : vector<1x8x1xf32> to vector<1x8x32xf32>
    %119 = arith.subf %106, %118 : vector<1x8x32xf32>
    %cst_40 = arith.constant 9.99999974E-6 : f32
    %120 = vector.broadcast %cst_40 : f32 to vector<1x8x1xf32>
    %121 = arith.addf %117, %120 : vector<1x8x1xf32>
    %122 = math.rsqrt %121 : vector<1x8x1xf32>
    %123 = vector.broadcast %122 : vector<1x8x1xf32> to vector<1x8x32xf32>
    %124 = arith.mulf %119, %123 : vector<1x8x32xf32>
    %c0_41 = arith.constant 0 : index
    %c0_42 = arith.constant 0 : index
    %125 = vector.load %arg5[%c0_41, %c0_42] : memref<1x32xf32, #tpu.memory_space<vmem>>, vector<1x32xf32>
    %126 = vector.shape_cast %125 : vector<1x32xf32> to vector<1x1x32xf32>
    %127 = vector.broadcast %126 : vector<1x1x32xf32> to vector<1x8x32xf32>
    %128 = arith.mulf %124, %127 : vector<1x8x32xf32>
    %c0_43 = arith.constant 0 : index
    %c0_44 = arith.constant 0 : index
    %129 = vector.load %arg6[%c0_43, %c0_44] : memref<1x32xf32, #tpu.memory_space<vmem>>, vector<1x32xf32>
    %130 = vector.shape_cast %129 : vector<1x32xf32> to vector<1x1x32xf32>
    %131 = vector.broadcast %130 : vector<1x1x32xf32> to vector<1x8x32xf32>
    %132 = arith.addf %128, %131 : vector<1x8x32xf32>
    %c0_45 = arith.constant 0 : index
    %c0_46 = arith.constant 0 : index
    %c0_47 = arith.constant 0 : index
    %133 = vector.load %arg7[%c0_45, %c0_46, %c0_47] : memref<1x8x32xf32, #tpu.memory_space<vmem>>, vector<1x8x32xf32>
    tpu.vector_store %arg7[%c0_45, %c0_46, %c0_47], %132 {strides = array<i32>} : memref<1x8x32xf32, #tpu.memory_space<vmem>>, vector<1x8x32xf32>,
    return
  }
  func.func @transform_0(%arg0: i32) -> (i32, i32, i32) {
    %c0_i32 = arith.constant 0 : i32
    %c0_i32_0 = arith.constant 0 : i32
    %c0_i32_1 = arith.constant 0 : i32
    return %arg0, %c0_i32, %c0_i32_0 : i32, i32, i32
  }
  func.func @transform_1(%arg0: i32) -> (i32, i32) {
    %c0_i32 = arith.constant 0 : i32
    %c0_i32_0 = arith.constant 0 : i32
    %c0_i32_1 = arith.constant 0 : i32
    return %c0_i32, %c0_i32_0 : i32, i32
  }
  func.func @transform_2(%arg0: i32) -> (i32, i32, i32) {
    %c0_i32 = arith.constant 0 : i32
    %c0_i32_0 = arith.constant 0 : i32
    %c0_i32_1 = arith.constant 0 : i32
    %c0_i32_2 = arith.constant 0 : i32
    return %c0_i32, %c0_i32_0, %c0_i32_1 : i32, i32, i32
  }
  func.func @transform_3(%arg0: i32) -> (i32, i32) {
    %c0_i32 = arith.constant 0 : i32
    %c0_i32_0 = arith.constant 0 : i32
    %c0_i32_1 = arith.constant 0 : i32
    return %c0_i32, %c0_i32_0 : i32, i32
  }
  func.func @transform_4(%arg0: i32) -> (i32, i32) {
    %c0_i32 = arith.constant 0 : i32
    %c0_i32_0 = arith.constant 0 : i32
    %c0_i32_1 = arith.constant 0 : i32
    return %c0_i32, %c0_i32_0 : i32, i32
  }
  func.func @transform_5(%arg0: i32) -> (i32, i32) {
    %c0_i32 = arith.constant 0 : i32
    %c0_i32_0 = arith.constant 0 : i32
    %c0_i32_1 = arith.constant 0 : i32
    return %c0_i32, %c0_i32_0 : i32, i32
  }
  func.func @transform_6(%arg0: i32) -> (i32, i32, i32) {
    %c0_i32 = arith.constant 0 : i32
    %c0_i32_0 = arith.constant 0 : i32
    %c0_i32_1 = arith.constant 0 : i32
    return %arg0, %c0_i32, %c0_i32_0 : i32, i32, i32
  }
}

</mosaic_0001>

<llo_original>
// kernel: tpu_custom_call.1
$region0: #{tpu_custom_call.1}
  #allocation0 [shape = 'u32[]', space=smem, size = 0x4, offset = 0x4, fixed_abs, tag = 'smem constant byte address 0x4 - core index']
  #allocation1 [shape = 'u32[144,128]{1,0:T(1,128)}', space=vmem, size = 0x12000, scoped, tag = 'internal scratch']
  %s0 = inlined_call_operand.hbm [shape: f32[2,8,96], index: 0, kind: input, shape index: {}]
  %s1 = inlined_call_operand.hbm [shape: f32[96,96], index: 1, kind: input, shape index: {}]
  %s2 = inlined_call_operand.hbm [shape: f32[4,8,32], index: 2, kind: input, shape index: {}]
  %s3 = inlined_call_operand.vmem [shape: f32[1,32], index: 3, kind: input, shape index: {}]
  %s4 = inlined_call_operand.vmem [shape: f32[1,32], index: 4, kind: input, shape index: {}]
  %s5 = inlined_call_operand.vmem [shape: f32[1,32], index: 5, kind: input, shape index: {}]
  %s6 = inlined_call_operand.hbm [shape: f32[2,8,32], index: 6, kind: output, shape index: {}]
  %s7 = sld [smem:[#allocation0]]
  $region69: #{tpu_custom_call.1} parent=0
    _
  %s9 = ssub.s32 1, %s7
  %s10 = scalar_select 0, %s9, %s7
  $region1: #{tpu_custom_call.1} parent=0
    #allocation2 [shape = 'u8[8192]{0}', space=vmem, size = 0x2000, scoped, tag = 'input window, operand 0']
    #allocation3 [shape = 's32[2]{0}', space=sflag, size = 0x8, scoped, tag = 'scoped memory for tpu_custom_call.1']
    #allocation4 [shape = 's32[2]{0}', space=sflag, size = 0x8, scoped, tag = 'scoped memory for tpu_custom_call.1']
    #allocation5 [shape = 'u8[49152]{0}', space=vmem, size = 0xc000, scoped, tag = 'input window, operand 1, single buffered']
    #allocation6 [shape = 's32[1]{0}', space=sflag, size = 0x4, scoped, tag = 'scoped memory for tpu_custom_call.1']
    #allocation7 [shape = 'u8[16384]{0}', space=vmem, size = 0x4000, scoped, tag = 'input window, operand 2, single buffered']
    #allocation8 [shape = 'u8[8192]{0}', space=vmem, size = 0x2000, scoped, tag = 'output window, operand 0']
    %11 = vsyncpa [#allocation3], 0
    %s12 = scalar_lea.sflag [#allocation3], 1
    %13 = vsyncpa %s12, 0
    %14 = vsyncpa [#allocation6], 0
    %15 = vsyncpa [#allocation4], 0
    %s16 = scalar_lea.sflag [#allocation4], 1
    %17 = vsyncpa %s16, 0
    loop: start=0, step=1, limit=4
    $region2: #{tpu_custom_call.1} parent=1 // loop_pre_header
      _
    $region3: #{tpu_custom_call.1} parent=1 // loop_header
      %s19 = sphi 0, %s23
      %p20 = scmp.ge.s32.totalorder %s19, 4
      %s29 = sphi 0, %s31
      %s32 = sphi 0, %s29
      %s33 = sphi 0, %s32
      %s49 = sphi 0, %s33
      %s53 = sphi 0, %s53
      %s55 = sphi 0, %s53
      %s56 = sphi 0, %s55
      %s70 = sphi 0, %s56
      %s74 = sphi 0, %s74
      %s76 = sphi 0, %s74
      %s77 = sphi 0, %s76
      %s91 = sphi 0, %s77
      %s95 = sphi 0, %s95
      %s97 = sphi 0, %s95
      %s98 = sphi 0, %s97
      %s112 = sphi 0, %s98
      %s116 = sphi 0, %s116
      %s118 = sphi 0, %s116
      %s119 = sphi 0, %s118
      %s133 = sphi 0, %s119
      %s137 = sphi 0, %s137
      %s139 = sphi 0, %s137
      %s140 = sphi 0, %s139
      %s154 = sphi 0, %s140
      %s160 = sphi 0, %s162
      %s163 = sphi 0, %s160
      %s164 = sphi 0, %s163
      %s180 = sphi 0, %s164
    $region4: #{tpu_custom_call.1} parent=1 // loop_header_branch
      %22 = sbr.rel (%p20) target = $region8
    $region5: #{tpu_custom_call.1} parent=1 // loop_body
      %s24 = ssub.s32 %s19, 1
      %s25 = ssub.s32 %s19, 2
      %s26 = sadd.s32 %s19, 1
      %s27 = ssub.s32 %s19, %s26
      %p28 = scmp.eq.s32.totalorder %s27, 0
      %s30 = sadd.s32 %s29, 1
      %s31 = scalar_select %p28, %s29, %s30
      %p34 = pneg %p28
      %p35 = scmp.eq.s32.totalorder %s19, 1
      %p36 = por %p34, %p35
      %p37 = scmp.ne.s32.totalorder %s29, %s32
      %p38 = scmp.eq.s32.totalorder %s19, 0
      %p39 = por %p37, %p38
      %p40 = scmp.ne.s32.totalorder %s29, %s32
      %p41 = scmp.eq.s32.totalorder %s24, 1
      %p42 = por %p40, %p41
      %p43 = scmp.ne.s32.totalorder %s32, %s33
      %p44 = scmp.eq.s32.totalorder %s24, 0
      %p45 = por %p43, %p44
      %p46 = scmp.ne.s32.totalorder %s32, %s33
      %p47 = scmp.eq.s32.totalorder %s25, 1
      %p48 = por %p46, %p47
      %p50 = scmp.ne.s32.totalorder %s33, %s49
      %p51 = scmp.eq.s32.totalorder %s25, 0
      %p52 = por %p50, %p51
      %s54 = sadd.s32 %s53, 1
      %p57 = scmp.eq.s32.totalorder %s19, 1
      %p58 = scmp.ne.s32.totalorder %s53, %s55
      %p59 = scmp.eq.s32.totalorder %s19, 0
      %p60 = por %p58, %p59
      %p61 = scmp.ne.s32.totalorder %s53, %s55
      %p62 = scmp.eq.s32.totalorder %s24, 1
      %p63 = por %p61, %p62
      %p64 = scmp.ne.s32.totalorder %s55, %s56
      %p65 = scmp.eq.s32.totalorder %s24, 0
      %p66 = por %p64, %p65
      %p67 = scmp.ne.s32.totalorder %s55, %s56
      %p68 = scmp.eq.s32.totalorder %s25, 1
      %p69 = por %p67, %p68
      %p71 = scmp.ne.s32.totalorder %s56, %s70
      %p72 = scmp.eq.s32.totalorder %s25, 0
      %p73 = por %p71, %p72
      %s75 = sadd.s32 %s74, 1
      %p78 = scmp.eq.s32.totalorder %s19, 1
      %p79 = scmp.ne.s32.totalorder %s74, %s76
      %p80 = scmp.eq.s32.totalorder %s19, 0
      %p81 = por %p79, %p80
      %p82 = scmp.ne.s32.totalorder %s74, %s76
      %p83 = scmp.eq.s32.totalorder %s24, 1
      %p84 = por %p82, %p83
      %p85 = scmp.ne.s32.totalorder %s76, %s77
      %p86 = scmp.eq.s32.totalorder %s24, 0
      %p87 = por %p85, %p86
      %p88 = scmp.ne.s32.totalorder %s76, %s77
      %p89 = scmp.eq.s32.totalorder %s25, 1
      %p90 = por %p88, %p89
      %p92 = scmp.ne.s32.totalorder %s77, %s91
      %p93 = scmp.eq.s32.totalorder %s25, 0
      %p94 = por %p92, %p93
      %s96 = sadd.s32 %s95, 1
      %p99 = scmp.eq.s32.totalorder %s19, 1
      %p100 = scmp.ne.s32.totalorder %s95, %s97
      %p101 = scmp.eq.s32.totalorder %s19, 0
      %p102 = por %p100, %p101
      %p103 = scmp.ne.s32.totalorder %s95, %s97
      %p104 = scmp.eq.s32.totalorder %s24, 1
      %p105 = por %p103, %p104
      %p106 = scmp.ne.s32.totalorder %s97, %s98
      %p107 = scmp.eq.s32.totalorder %s24, 0
      %p108 = por %p106, %p107
      %p109 = scmp.ne.s32.totalorder %s97, %s98
      %p110 = scmp.eq.s32.totalorder %s25, 1
      %p111 = por %p109, %p110
      %p113 = scmp.ne.s32.totalorder %s98, %s112
      %p114 = scmp.eq.s32.totalorder %s25, 0
      %p115 = por %p113, %p114
      %s117 = sadd.s32 %s116, 1
      %p120 = scmp.eq.s32.totalorder %s19, 1
      %p121 = scmp.ne.s32.totalorder %s116, %s118
      %p122 = scmp.eq.s32.totalorder %s19, 0
      %p123 = por %p121, %p122
      %p124 = scmp.ne.s32.totalorder %s116, %s118
      %p125 = scmp.eq.s32.totalorder %s24, 1
      %p126 = por %p124, %p125
      %p127 = scmp.ne.s32.totalorder %s118, %s119
      %p128 = scmp.eq.s32.totalorder %s24, 0
      %p129 = por %p127, %p128
      %p130 = scmp.ne.s32.totalorder %s118, %s119
      %p131 = scmp.eq.s32.totalorder %s25, 1
      %p132 = por %p130, %p131
      %p134 = scmp.ne.s32.totalorder %s119, %s133
      %p135 = scmp.eq.s32.totalorder %s25, 0
      %p136 = por %p134, %p135
      %s138 = sadd.s32 %s137, 1
      %p141 = scmp.eq.s32.totalorder %s19, 1
      %p142 = scmp.ne.s32.totalorder %s137, %s139
      %p143 = scmp.eq.s32.totalorder %s19, 0
      %p144 = por %p142, %p143
      %p145 = scmp.ne.s32.totalorder %s137, %s139
      %p146 = scmp.eq.s32.totalorder %s24, 1
      %p147 = por %p145, %p146
      %p148 = scmp.ne.s32.totalorder %s139, %s140
      %p149 = scmp.eq.s32.totalorder %s24, 0
      %p150 = por %p148, %p149
      %p151 = scmp.ne.s32.totalorder %s139, %s140
      %p152 = scmp.eq.s32.totalorder %s25, 1
      %p153 = por %p151, %p152
      %p155 = scmp.ne.s32.totalorder %s140, %s154
      %p156 = scmp.eq.s32.totalorder %s25, 0
      %p157 = por %p155, %p156
      %s158 = ssub.s32 %s19, %s26
      %p159 = scmp.eq.s32.totalorder %s158, 0
      %s161 = sadd.s32 %s160, 1
      %s162 = scalar_select %p159, %s160, %s161
      %p165 = pneg %p159
      %p166 = scmp.eq.s32.totalorder %s19, 1
      %p167 = por %p165, %p166
      %p168 = scmp.ne.s32.totalorder %s160, %s163
      %p169 = scmp.eq.s32.totalorder %s19, 0
      %p170 = por %p168, %p169
      %p171 = scmp.ne.s32.totalorder %s160, %s163
      %p172 = scmp.eq.s32.totalorder %s24, 1
      %p173 = por %p171, %p172
      %p174 = scmp.ne.s32.totalorder %s163, %s164
      %p175 = scmp.eq.s32.totalorder %s24, 0
      %p176 = por %p174, %p175
      %p177 = scmp.ne.s32.totalorder %s163, %s164
      %p178 = scmp.eq.s32.totalorder %s25, 1
      %p179 = por %p177, %p178
      %p181 = scmp.ne.s32.totalorder %s164, %s180
      %p182 = scmp.eq.s32.totalorder %s25, 0
      %p183 = por %p181, %p182
      %p184 = scmp.le.s32.totalorder 1, %s19
      %p185 = scmp.lt.s32.totalorder %s19, 3
      %p186 = pnand %p184, %p185
      %p187 = pneg %p186
      // Predicated region
      $region9: #{tpu_custom_call.1} parent=5 // pred_check
        _
      $region10: #{tpu_custom_call.1} parent=5 // pred_check_branch
        %189 = sbr.rel (%p186) target = $region12
      $region11: #{tpu_custom_call.1} parent=5 // pred_region
        %s190 = ssub.s32 %s19, 1
        // Predicated region
        $region13: #{tpu_custom_call.1} parent=11 // pred_check
          %p191 = pneg %p66
        $region14: #{tpu_custom_call.1} parent=11 // pred_check_branch
          %193 = sbr.rel (%p191) target = $region16
        $region15: #{tpu_custom_call.1} parent=11 // pred_region
          %s195 = ssub.s32 1536, 1536
          %196 = vsyncadd [#allocation6], %s195
          %s197 = sshll.u32 [#allocation5], 4
          %s198 = int_to_ptr.vmem [resolvable:$true] %s197
          %203 = dma.hbm_to_vmem [thread:$0]  %s1, 1536, %s198, [#allocation6], 128, 128, 8
        $region16: #{tpu_custom_call.1} parent=11 // pred_fallthru
          _
        // Predicated region
        $region17: #{tpu_custom_call.1} parent=11 // pred_check
          %p204 = pneg %p87
        $region18: #{tpu_custom_call.1} parent=11 // pred_check_branch
          %206 = sbr.rel (%p204) target = $region20
        $region19: #{tpu_custom_call.1} parent=11 // pred_region
          %s208 = ssub.s32 512, 512
          %209 = vsyncadd [#allocation6], %s208
          %s210 = sshll.u32 [#allocation7], 4
          %s211 = int_to_ptr.vmem [resolvable:$true] %s210
          %216 = dma.hbm_to_vmem [thread:$0]  %s2, 512, %s211, [#allocation6], 128, 128, 8
        $region20: #{tpu_custom_call.1} parent=11 // pred_fallthru
          _
        // Predicated region
        $region21: #{tpu_custom_call.1} parent=11 // pred_check
          %p217 = pneg %p108
        $region22: #{tpu_custom_call.1} parent=11 // pred_check_branch
          %219 = sbr.rel (%p217) target = $region24
        $region23: #{tpu_custom_call.1} parent=11 // pred_region
          _
        $region24: #{tpu_custom_call.1} parent=11 // pred_fallthru
          _
        // Predicated region
        $region25: #{tpu_custom_call.1} parent=11 // pred_check
          %p220 = pneg %p129
        $region26: #{tpu_custom_call.1} parent=11 // pred_check_branch
          %222 = sbr.rel (%p220) target = $region28
        $region27: #{tpu_custom_call.1} parent=11 // pred_region
          _
        $region28: #{tpu_custom_call.1} parent=11 // pred_fallthru
          _
        // Predicated region
        $region29: #{tpu_custom_call.1} parent=11 // pred_check
          %p223 = pneg %p150
        $region30: #{tpu_custom_call.1} parent=11 // pred_check_branch
          %225 = sbr.rel (%p223) target = $region32
        $region31: #{tpu_custom_call.1} parent=11 // pred_region
          _
        $region32: #{tpu_custom_call.1} parent=11 // pred_fallthru
          _
      $region12: #{tpu_custom_call.1} parent=5 // pred_fallthru
        _
      %p226 = scmp.lt.s32.totalorder %s19, 2
      // Predicated region
      $region33: #{tpu_custom_call.1} parent=5 // pred_check
        %p227 = pneg %p226
      $region34: #{tpu_custom_call.1} parent=5 // pred_check_branch
        %229 = sbr.rel (%p227) target = $region36
      $region35: #{tpu_custom_call.1} parent=5 // pred_region
        // Predicated region
        $region37: #{tpu_custom_call.1} parent=35 // pred_check
          %p230 = pneg %p39
        $region38: #{tpu_custom_call.1} parent=35 // pred_check_branch
          %232 = sbr.rel (%p230) target = $region40
        $region39: #{tpu_custom_call.1} parent=35 // pred_region
          %s233 = sand.u32 %s29, 1
          %s234 = scalar_lea.sflag [#allocation3], %s233
          %s235 = sand.u32 %s29, 1
          %s236 = smul.addr %s235, 8
          %s237 = scalar_lea.vmem [#allocation2], %s236
          %s239 = ssub.s32 128, 128
          %240 = vsyncadd %s234, %s239
          %s241 = smul.addr %s19, 128
          %s242 = scalar_lea.hbm %s0, %s241
          %s244 = sshll.u32 %s237, 4
          %s245 = int_to_ptr.vmem [resolvable:$true] %s244
          %247 = dma.hbm_to_vmem [thread:$0]  %s242, 128, %s245, %s234
        $region40: #{tpu_custom_call.1} parent=35 // pred_fallthru
          _
      $region36: #{tpu_custom_call.1} parent=5 // pred_fallthru
        _
      %p248 = scmp.le.s32.totalorder 1, %s19
      %p249 = scmp.lt.s32.totalorder %s19, 3
      %p250 = pnand %p248, %p249
      %p251 = pneg %p250
      // Predicated region
      $region41: #{tpu_custom_call.1} parent=5 // pred_check
        _
      $region42: #{tpu_custom_call.1} parent=5 // pred_check_branch
        %253 = sbr.rel (%p250) target = $region44
      $region43: #{tpu_custom_call.1} parent=5 // pred_region
        %s254 = ssub.s32 %s19, 1
        %s255 = sand.u32 %s32, 1
        %s256 = scalar_lea.sflag [#allocation3], %s255
        %s257 = sand.u32 %s32, 1
        %s258 = smul.addr %s257, 8
        %s259 = scalar_lea.vmem [#allocation2], %s258
        // Predicated region
        $region45: #{tpu_custom_call.1} parent=43 // pred_check
          %p260 = pneg %p45
        $region46: #{tpu_custom_call.1} parent=43 // pred_check_branch
          %262 = sbr.rel (%p260) target = $region48
        $region47: #{tpu_custom_call.1} parent=43 // pred_region
          %263 = dma.done %s256, 128
        $region48: #{tpu_custom_call.1} parent=43 // pred_fallthru
          _
        // Predicated region
        $region49: #{tpu_custom_call.1} parent=43 // pred_check
          %p264 = pneg %p66
        $region50: #{tpu_custom_call.1} parent=43 // pred_check_branch
          %266 = sbr.rel (%p264) target = $region52
        $region51: #{tpu_custom_call.1} parent=43 // pred_region
          %267 = dma.done [#allocation6], 1536
        $region52: #{tpu_custom_call.1} parent=43 // pred_fallthru
          _
        // Predicated region
        $region53: #{tpu_custom_call.1} parent=43 // pred_check
          %p268 = pneg %p87
        $region54: #{tpu_custom_call.1} parent=43 // pred_check_branch
          %270 = sbr.rel (%p268) target = $region56
        $region55: #{tpu_custom_call.1} parent=43 // pred_region
          %271 = dma.done [#allocation6], 512
        $region56: #{tpu_custom_call.1} parent=43 // pred_fallthru
          _
        %s272 = sand.u32 %s32, 1
        %s273 = scalar_lea.sflag [#allocation3], %s272
        %s274 = sand.u32 %s32, 1
        %s275 = smul.addr %s274, 8
        %s276 = scalar_lea.vmem [#allocation2], %s275
        %p277 = pneg %p45
        %p278 = pneg %p42
        %p279 = pneg %p66
        %p280 = pneg %p63
        %p281 = pneg %p87
        %p282 = pneg %p84
        %p283 = pneg %p108
        %p284 = pneg %p105
        %p285 = pneg %p129
        %p286 = pneg %p126
        %p287 = pneg %p150
        %p288 = pneg %p147
        %p289 = pneg %p176
        %p290 = pneg %p173
        %s291 = sand.u32 %s163, 1
        %s292 = scalar_lea.sflag [#allocation4], %s291
        %s293 = sand.u32 %s163, 1
        %s294 = smul.addr %s293, 8
        %s295 = scalar_lea.vmem [#allocation8], %s294
        %v296 = vld [vmem:[%s259] sm:$0xff]
        %v297 = vld [vmem:[#allocation5] sm:$0xff]
        %v298 = vld [vmem:[#allocation5 + $0x8] sm:$0xff]
        %v299 = vld [vmem:[#allocation5 + $0x10] sm:$0xff]
        %v300 = vld [vmem:[#allocation5 + $0x18] sm:$0xff]
        %v301 = vld [vmem:[#allocation5 + $0x20] sm:$0xff]
        %v302 = vld [vmem:[#allocation5 + $0x28] sm:$0xff]
        %v303 = vld [vmem:[#allocation5 + $0x30] sm:$0xff]
        %v304 = vld [vmem:[#allocation5 + $0x38] sm:$0xff]
        %v305 = vld [vmem:[#allocation5 + $0x40] sm:$0xff]
        %v306 = vld [vmem:[#allocation5 + $0x48] sm:$0xff]
        %v307 = vld [vmem:[#allocation5 + $0x50] sm:$0xff]
        %v308 = vld [vmem:[#allocation5 + $0x58] sm:$0xff]
        %vm309 = vcmask 785408
        %v311 = vsel %vm309, %v296, 0
        %313 = vmatprep.subr.mxu0 0.0
        %314 = vmatpush1.msra.mxu0 %v297
        %315 = vmatprep.subr.mxu0 0.0
        %316 = vmatpush1.msra.mxu0 %v298
        %317 = vmatprep.subr.mxu0 0.0
        %318 = vmatpush1.msra.mxu0 %v299
        %319 = vmatprep.subr.mxu0 0.0
        %320 = vmatpush1.msra.mxu0 %v300
        %321 = vmatprep.subr.mxu0 0.0
        %322 = vmatpush1.msra.mxu0 %v301
        %323 = vmatprep.subr.mxu0 0.0
        %324 = vmatpush1.msra.mxu0 %v302
        %325 = vmatprep.subr.mxu0 0.0
        %326 = vmatpush1.msra.mxu0 %v303
        %327 = vmatprep.subr.mxu0 0.0
        %328 = vmatpush1.msra.mxu0 %v304
        %329 = vmatprep.subr.mxu0 0.0
        %330 = vmatpush1.msra.mxu0 %v305
        %331 = vmatprep.subr.mxu0 0.0
        %332 = vmatpush1.msra.mxu0 %v306
        %333 = vmatprep.subr.mxu0 0.0
        %334 = vmatpush1.msra.mxu0 %v307
        %335 = vmatprep.subr.mxu0 0.0
        %336 = vmatpush1.msra.mxu0 %v308
        %337 = vmatprep.subr.mxu0 0.0
        %338 = vmatpush1.msra.mxu0 0.0
        %339 = vmatprep.subr.mxu0 0.0
        %340 = vmatpush1.msra.mxu0 0.0
        %341 = vmatprep.subr.mxu0 0.0
        %342 = vmatpush1.msra.mxu0 0.0
        %343 = vmatprep.subr.mxu0 0.0
        %344 = vmatpush1.msra.mxu0 0.0
        %345 = vmatprep.subr.mxu0 0.0
        %346 = vmatpush1.msra.mxu0 0.0
        %347 = vmatprep.subr.mxu0 0.0
        %348 = vmatpush1.msra.mxu0 0.0
        %349 = vmatprep.subr.mxu0 0.0
        %350 = vmatpush1.msra.mxu0 0.0
        %351 = vmatprep.subr.mxu0 0.0
        %352 = vmatpush1.msra.mxu0 0.0
        %353 = vmatprep.subr.mxu0 0.0
        %354 = vmatpush1.msra.mxu0 0.0
        %355 = vmatprep.subr.mxu0 0.0
        %356 = vmatpush1.msra.mxu0 0.0
        %357 = vmatprep.subr.mxu0 0.0
        %358 = vmatpush1.msra.mxu0 0.0
        %359 = vmatprep.subr.mxu0 0.0
        %360 = vmatpush1.msra.mxu0 0.0
        %361 = vmatprep.subr.mxu0 0.0
        %362 = vmatpush1.msra.mxu0 0.0
        %363 = vmatprep.subr.mxu0 0.0
        %364 = vmatpush1.msra.mxu0 0.0
        %365 = vmatprep.subr.mxu0 0.0
        %366 = vmatpush1.msra.mxu0 0.0
        %367 = vmatprep.subr.mxu0 0.0
        %368 = vmatpush1.msra.mxu0 0.0
        %369 = vmatprep.subr.mxu0 0.0
        %370 = vmatpush1.msra.mxu0 0.0
        %371 = vmatprep.subr.mxu0 0.0
        %372 = vmatpush1.msra.mxu0 0.0
        %373 = vmatprep.subr.mxu0 0.0
        %374 = vmatpush1.msra.mxu0 0.0
        %375 = vmatprep.subr.mxu0 0.0
        %376 = vmatpush1.msra.mxu0 0.0
        %377 = vmatprep.mubr.f32.mxu0 0.0
        %378 = vmatmul.mubr.f32.gmra.mrb[0].mxu0 %v311
        %v379 = vpop.f32.mrb[0].mxu0
        %v380 = vadd.f32 0.0, %v379
        %v381 = vpop.f32.mrb[0].mxu0
        %382 = vdwg.mxu0
        %384 = vrot.lane.b32.xlu0 %v380, 96
        %v385 = vpop.permute.xlu0 %384
        %vm386 = vcmask 64512
        %v387 = vsel %vm386, %v380, 0
        %v389 = vsel %vm386, %v385, 0
        %391 = vmatprep.subr.mxu0 0.0
        %392 = vmatpush1.xpose.msra.mxu0 %v389
        %393 = vmatprep.subr.mxu0 0.0
        %394 = vmatpush1.xpose.msra.mxu0 0.0
        %395 = vmatprep.subr.mxu0 0.0
        %396 = vmatpush1.xpose.msra.mxu0 0.0
        %397 = vmatprep.subr.mxu0 0.0
        %398 = vmatpush1.xpose.msra.mxu0 0.0
        %399 = vmatprep.subr.mxu0 0.0
        %400 = vmatpush1.xpose.msra.mxu0 0.0
        %401 = vmatprep.subr.mxu0 0.0
        %402 = vmatpush1.xpose.msra.mxu0 0.0
        %403 = vmatprep.subr.mxu0 0.0
        %404 = vmatpush1.xpose.msra.mxu0 0.0
        %405 = vmatprep.subr.mxu0 0.0
        %406 = vmatpush1.xpose.msra.mxu0 0.0
        %407 = vmatprep.subr.mxu0 0.0
        %408 = vmatpush1.xpose.msra.mxu0 0.0
        %409 = vmatprep.subr.mxu0 0.0
        %410 = vmatpush1.xpose.msra.mxu0 0.0
        %411 = vmatprep.subr.mxu0 0.0
        %412 = vmatpush1.xpose.msra.mxu0 0.0
        %413 = vmatprep.subr.mxu0 0.0
        %414 = vmatpush1.xpose.msra.mxu0 0.0
        %415 = vmatprep.subr.mxu0 0.0
        %416 = vmatpush1.xpose.msra.mxu0 0.0
        %417 = vmatprep.subr.mxu0 0.0
        %418 = vmatpush1.xpose.msra.mxu0 0.0
        %419 = vmatprep.subr.mxu0 0.0
        %420 = vmatpush1.xpose.msra.mxu0 0.0
        %421 = vmatprep.subr.mxu0 0.0
        %422 = vmatpush1.xpose.msra.mxu0 0.0
        %423 = vmatprep.subr.mxu0 0.0
        %424 = vmatpush1.xpose.msra.mxu0 0.0
        %425 = vmatprep.subr.mxu0 0.0
        %426 = vmatpush1.xpose.msra.mxu0 0.0
        %427 = vmatprep.subr.mxu0 0.0
        %428 = vmatpush1.xpose.msra.mxu0 0.0
        %429 = vmatprep.subr.mxu0 0.0
        %430 = vmatpush1.xpose.msra.mxu0 0.0
        %431 = vmatprep.subr.mxu0 0.0
        %432 = vmatpush1.xpose.msra.mxu0 0.0
        %433 = vmatprep.subr.mxu0 0.0
        %434 = vmatpush1.xpose.msra.mxu0 0.0
        %435 = vmatprep.subr.mxu0 0.0
        %436 = vmatpush1.xpose.msra.mxu0 0.0
        %437 = vmatprep.subr.mxu0 0.0
        %438 = vmatpush1.xpose.msra.mxu0 0.0
        %439 = vmatprep.subr.mxu0 0.0
        %440 = vmatpush1.xpose.msra.mxu0 0.0
        %441 = vmatprep.subr.mxu0 0.0
        %442 = vmatpush1.xpose.msra.mxu0 0.0
        %443 = vmatprep.subr.mxu0 0.0
        %444 = vmatpush1.xpose.msra.mxu0 0.0
        %445 = vmatprep.subr.mxu0 0.0
        %446 = vmatpush1.xpose.msra.mxu0 0.0
        %447 = vmatprep.subr.mxu0 0.0
        %448 = vmatpush1.xpose.msra.mxu0 0.0
        %449 = vmatprep.subr.mxu0 0.0
        %450 = vmatpush1.xpose.msra.mxu0 0.0
        %451 = vmatprep.subr.mxu0 0.0
        %452 = vmatpush1.xpose.msra.mxu0 0.0
        %453 = vmatprep.subr.mxu0 0.0
        %454 = vmatpush1.xpose.msra.mxu0 0.0
        %455 = vmatprep.mubr.f32.mxu0 0.0
        %456 = vmatmul.mubr.f32.gmra.mrb[0].mxu0 %v387
        %v457 = vpop.f32.mrb[0].mxu0
        %v458 = vadd.f32 0.0, %v457
        %v459 = vpop.f32.mrb[0].mxu0
        %460 = vdwg.mxu0
        %v461 = vsel %vm386, %v458, -inf
        %462 = vmax.xlane.f32.xlu0 %v461
        %v463 = vpop.xlane.xlu0 %462
        %v464 = vsub.f32 %v458, %v463
        %v465 = vmul.f32 %v464, 1.442695
        %v466 = vpow.pop %v465
        %v467 = vsel %vm386, %v466, 0.0
        %468 = vadd.xlane.f32.xlu0 %v467
        %v469 = vpop.xlane.xlu0 %468
        %v470 = vrcp.pop %v469
        %v471 = vmul.f32 %v466, %v470
        %472 = vrot.lane.b32.xlu0 %v380, 64
        %v473 = vpop.permute.xlu0 %472
        %v476 = vsel %vm386, %v471, 0
        %478 = vmatprep.subr.mxu0 0.0
        %479 = vmatpush1.msra.mxu0 %v473
        %480 = vmatprep.subr.mxu0 0.0
        %481 = vmatpush1.msra.mxu0 0.0
        %482 = vmatprep.subr.mxu0 0.0
        %483 = vmatpush1.msra.mxu0 0.0
        %484 = vmatprep.subr.mxu0 0.0
        %485 = vmatpush1.msra.mxu0 0.0
        %486 = vmatprep.subr.mxu0 0.0
        %487 = vmatpush1.msra.mxu0 0.0
        %488 = vmatprep.subr.mxu0 0.0
        %489 = vmatpush1.msra.mxu0 0.0
        %490 = vmatprep.subr.mxu0 0.0
        %491 = vmatpush1.msra.mxu0 0.0
        %492 = vmatprep.subr.mxu0 0.0
        %493 = vmatpush1.msra.mxu0 0.0
        %494 = vmatprep.subr.mxu0 0.0
        %495 = vmatpush1.msra.mxu0 0.0
        %496 = vmatprep.subr.mxu0 0.0
        %497 = vmatpush1.msra.mxu0 0.0
        %498 = vmatprep.subr.mxu0 0.0
        %499 = vmatpush1.msra.mxu0 0.0
        %500 = vmatprep.subr.mxu0 0.0
        %501 = vmatpush1.msra.mxu0 0.0
        %502 = vmatprep.subr.mxu0 0.0
        %503 = vmatpush1.msra.mxu0 0.0
        %504 = vmatprep.subr.mxu0 0.0
        %505 = vmatpush1.msra.mxu0 0.0
        %506 = vmatprep.subr.mxu0 0.0
        %507 = vmatpush1.msra.mxu0 0.0
        %508 = vmatprep.subr.mxu0 0.0
        %509 = vmatpush1.msra.mxu0 0.0
        %510 = vmatprep.subr.mxu0 0.0
        %511 = vmatpush1.msra.mxu0 0.0
        %512 = vmatprep.subr.mxu0 0.0
        %513 = vmatpush1.msra.mxu0 0.0
        %514 = vmatprep.subr.mxu0 0.0
        %515 = vmatpush1.msra.mxu0 0.0
        %516 = vmatprep.subr.mxu0 0.0
        %517 = vmatpush1.msra.mxu0 0.0
        %518 = vmatprep.subr.mxu0 0.0
        %519 = vmatpush1.msra.mxu0 0.0
        %520 = vmatprep.subr.mxu0 0.0
        %521 = vmatpush1.msra.mxu0 0.0
        %522 = vmatprep.subr.mxu0 0.0
        %523 = vmatpush1.msra.mxu0 0.0
        %524 = vmatprep.subr.mxu0 0.0
        %525 = vmatpush1.msra.mxu0 0.0
        %526 = vmatprep.subr.mxu0 0.0
        %527 = vmatpush1.msra.mxu0 0.0
        %528 = vmatprep.subr.mxu0 0.0
        %529 = vmatpush1.msra.mxu0 0.0
        %530 = vmatprep.subr.mxu0 0.0
        %531 = vmatpush1.msra.mxu0 0.0
        %532 = vmatprep.subr.mxu0 0.0
        %533 = vmatpush1.msra.mxu0 0.0
        %534 = vmatprep.subr.mxu0 0.0
        %535 = vmatpush1.msra.mxu0 0.0
        %536 = vmatprep.subr.mxu0 0.0
        %537 = vmatpush1.msra.mxu0 0.0
        %538 = vmatprep.subr.mxu0 0.0
        %539 = vmatpush1.msra.mxu0 0.0
        %540 = vmatprep.subr.mxu0 0.0
        %541 = vmatpush1.msra.mxu0 0.0
        %542 = vmatprep.mubr.f32.mxu0 0.0
        %543 = vmatmul.mubr.f32.gmra.mrb[0].mxu0 %v476
        %v544 = vpop.f32.mrb[0].mxu0
        %v545 = vadd.f32 0.0, %v544
        %v546 = vpop.f32.mrb[0].mxu0
        %547 = vdwg.mxu0
        %v548 = vld [vmem:[#allocation7] sm:$0xff]
        %v550 = vsel %vm386, %v545, 0
        %552 = vmatprep.subr.mxu0 0.0
        %553 = vmatpush1.msra.mxu0 %v548
        %554 = vmatprep.subr.mxu0 0.0
        %555 = vmatpush1.msra.mxu0 0.0
        %556 = vmatprep.subr.mxu0 0.0
        %557 = vmatpush1.msra.mxu0 0.0
        %558 = vmatprep.subr.mxu0 0.0
        %559 = vmatpush1.msra.mxu0 0.0
        %560 = vmatprep.subr.mxu0 0.0
        %561 = vmatpush1.msra.mxu0 0.0
        %562 = vmatprep.subr.mxu0 0.0
        %563 = vmatpush1.msra.mxu0 0.0
        %564 = vmatprep.subr.mxu0 0.0
        %565 = vmatpush1.msra.mxu0 0.0
        %566 = vmatprep.subr.mxu0 0.0
        %567 = vmatpush1.msra.mxu0 0.0
        %568 = vmatprep.subr.mxu0 0.0
        %569 = vmatpush1.msra.mxu0 0.0
        %570 = vmatprep.subr.mxu0 0.0
        %571 = vmatpush1.msra.mxu0 0.0
        %572 = vmatprep.subr.mxu0 0.0
        %573 = vmatpush1.msra.mxu0 0.0
        %574 = vmatprep.subr.mxu0 0.0
        %575 = vmatpush1.msra.mxu0 0.0
        %576 = vmatprep.subr.mxu0 0.0
        %577 = vmatpush1.msra.mxu0 0.0
        %578 = vmatprep.subr.mxu0 0.0
        %579 = vmatpush1.msra.mxu0 0.0
        %580 = vmatprep.subr.mxu0 0.0
        %581 = vmatpush1.msra.mxu0 0.0
        %582 = vmatprep.subr.mxu0 0.0
        %583 = vmatpush1.msra.mxu0 0.0
        %584 = vmatprep.subr.mxu0 0.0
        %585 = vmatpush1.msra.mxu0 0.0
        %586 = vmatprep.subr.mxu0 0.0
        %587 = vmatpush1.msra.mxu0 0.0
        %588 = vmatprep.subr.mxu0 0.0
        %589 = vmatpush1.msra.mxu0 0.0
        %590 = vmatprep.subr.mxu0 0.0
        %591 = vmatpush1.msra.mxu0 0.0
        %592 = vmatprep.subr.mxu0 0.0
        %593 = vmatpush1.msra.mxu0 0.0
        %594 = vmatprep.subr.mxu0 0.0
        %595 = vmatpush1.msra.mxu0 0.0
        %596 = vmatprep.subr.mxu0 0.0
        %597 = vmatpush1.msra.mxu0 0.0
        %598 = vmatprep.subr.mxu0 0.0
        %599 = vmatpush1.msra.mxu0 0.0
        %600 = vmatprep.subr.mxu0 0.0
        %601 = vmatpush1.msra.mxu0 0.0
        %602 = vmatprep.subr.mxu0 0.0
        %603 = vmatpush1.msra.mxu0 0.0
        %604 = vmatprep.subr.mxu0 0.0
        %605 = vmatpush1.msra.mxu0 0.0
        %606 = vmatprep.subr.mxu0 0.0
        %607 = vmatpush1.msra.mxu0 0.0
        %608 = vmatprep.subr.mxu0 0.0
        %609 = vmatpush1.msra.mxu0 0.0
        %610 = vmatprep.subr.mxu0 0.0
        %611 = vmatpush1.msra.mxu0 0.0
        %612 = vmatprep.subr.mxu0 0.0
        %613 = vmatpush1.msra.mxu0 0.0
        %614 = vmatprep.subr.mxu0 0.0
        %615 = vmatpush1.msra.mxu0 0.0
        %616 = vmatprep.mubr.f32.mxu0 0.0
        %617 = vmatmul.mubr.f32.gmra.mrb[0].mxu0 %v550
        %v618 = vpop.f32.mrb[0].mxu0
        %v619 = vadd.f32 0.0, %v618
        %v620 = vpop.f32.mrb[0].mxu0
        %621 = vdwg.mxu0
        %v622 = vadd.f32 %v619, 0.0
        %623 = vrot.lane.b32.xlu0 %v380, 120
        %v624 = vpop.permute.xlu0 %623
        %625 = vrot.lane.b32.xlu0 %v380, 88
        %v626 = vpop.permute.xlu0 %625
        %v627 = vsel %vm386, %v624, 0
        %v629 = vsel %vm386, %v626, 0
        %631 = vmatprep.subr.mxu0 0.0
        %632 = vmatpush1.xpose.msra.mxu0 %v629
        %633 = vmatprep.subr.mxu0 0.0
        %634 = vmatpush1.xpose.msra.mxu0 0.0
        %635 = vmatprep.subr.mxu0 0.0
        %636 = vmatpush1.xpose.msra.mxu0 0.0
        %637 = vmatprep.subr.mxu0 0.0
        %638 = vmatpush1.xpose.msra.mxu0 0.0
        %639 = vmatprep.subr.mxu0 0.0
        %640 = vmatpush1.xpose.msra.mxu0 0.0
        %641 = vmatprep.subr.mxu0 0.0
        %642 = vmatpush1.xpose.msra.mxu0 0.0
        %643 = vmatprep.subr.mxu0 0.0
        %644 = vmatpush1.xpose.msra.mxu0 0.0
        %645 = vmatprep.subr.mxu0 0.0
        %646 = vmatpush1.xpose.msra.mxu0 0.0
        %647 = vmatprep.subr.mxu0 0.0
        %648 = vmatpush1.xpose.msra.mxu0 0.0
        %649 = vmatprep.subr.mxu0 0.0
        %650 = vmatpush1.xpose.msra.mxu0 0.0
        %651 = vmatprep.subr.mxu0 0.0
        %652 = vmatpush1.xpose.msra.mxu0 0.0
        %653 = vmatprep.subr.mxu0 0.0
        %654 = vmatpush1.xpose.msra.mxu0 0.0
        %655 = vmatprep.subr.mxu0 0.0
        %656 = vmatpush1.xpose.msra.mxu0 0.0
        %657 = vmatprep.subr.mxu0 0.0
        %658 = vmatpush1.xpose.msra.mxu0 0.0
        %659 = vmatprep.subr.mxu0 0.0
        %660 = vmatpush1.xpose.msra.mxu0 0.0
        %661 = vmatprep.subr.mxu0 0.0
        %662 = vmatpush1.xpose.msra.mxu0 0.0
        %663 = vmatprep.subr.mxu0 0.0
        %664 = vmatpush1.xpose.msra.mxu0 0.0
        %665 = vmatprep.subr.mxu0 0.0
        %666 = vmatpush1.xpose.msra.mxu0 0.0
        %667 = vmatprep.subr.mxu0 0.0
        %668 = vmatpush1.xpose.msra.mxu0 0.0
        %669 = vmatprep.subr.mxu0 0.0
        %670 = vmatpush1.xpose.msra.mxu0 0.0
        %671 = vmatprep.subr.mxu0 0.0
        %672 = vmatpush1.xpose.msra.mxu0 0.0
        %673 = vmatprep.subr.mxu0 0.0
        %674 = vmatpush1.xpose.msra.mxu0 0.0
        %675 = vmatprep.subr.mxu0 0.0
        %676 = vmatpush1.xpose.msra.mxu0 0.0
        %677 = vmatprep.subr.mxu0 0.0
        %678 = vmatpush1.xpose.msra.mxu0 0.0
        %679 = vmatprep.subr.mxu0 0.0
        %680 = vmatpush1.xpose.msra.mxu0 0.0
        %681 = vmatprep.subr.mxu0 0.0
        %682 = vmatpush1.xpose.msra.mxu0 0.0
        %683 = vmatprep.subr.mxu0 0.0
        %684 = vmatpush1.xpose.msra.mxu0 0.0
        %685 = vmatprep.subr.mxu0 0.0
        %686 = vmatpush1.xpose.msra.mxu0 0.0
        %687 = vmatprep.subr.mxu0 0.0
        %688 = vmatpush1.xpose.msra.mxu0 0.0
        %689 = vmatprep.subr.mxu0 0.0
        %690 = vmatpush1.xpose.msra.mxu0 0.0
        %691 = vmatprep.subr.mxu0 0.0
        %692 = vmatpush1.xpose.msra.mxu0 0.0
        %693 = vmatprep.subr.mxu0 0.0
        %694 = vmatpush1.xpose.msra.mxu0 0.0
        %695 = vmatprep.mubr.f32.mxu0 0.0
        %696 = vmatmul.mubr.f32.gmra.mrb[0].mxu0 %v627
        %v697 = vpop.f32.mrb[0].mxu0
        %v698 = vadd.f32 0.0, %v697
        %v699 = vpop.f32.mrb[0].mxu0
        %700 = vdwg.mxu0
        %v701 = vsel %vm386, %v698, -inf
        %702 = vmax.xlane.f32.xlu0 %v701
        %v703 = vpop.xlane.xlu0 %702
        %v704 = vsub.f32 %v698, %v703
        %v705 = vmul.f32 %v704, 1.442695
        %v706 = vpow.pop %v705
        %v707 = vsel %vm386, %v706, 0.0
        %708 = vadd.xlane.f32.xlu0 %v707
        %v709 = vpop.xlane.xlu0 %708
        %v710 = vrcp.pop %v709
        %v711 = vmul.f32 %v706, %v710
        %712 = vrot.lane.b32.xlu0 %v380, 56
        %v713 = vpop.permute.xlu0 %712
        %v716 = vsel %vm386, %v711, 0
        %718 = vmatprep.subr.mxu0 0.0
        %719 = vmatpush1.msra.mxu0 %v713
        %720 = vmatprep.subr.mxu0 0.0
        %721 = vmatpush1.msra.mxu0 0.0
        %722 = vmatprep.subr.mxu0 0.0
        %723 = vmatpush1.msra.mxu0 0.0
        %724 = vmatprep.subr.mxu0 0.0
        %725 = vmatpush1.msra.mxu0 0.0
        %726 = vmatprep.subr.mxu0 0.0
        %727 = vmatpush1.msra.mxu0 0.0
        %728 = vmatprep.subr.mxu0 0.0
        %729 = vmatpush1.msra.mxu0 0.0
        %730 = vmatprep.subr.mxu0 0.0
        %731 = vmatpush1.msra.mxu0 0.0
        %732 = vmatprep.subr.mxu0 0.0
        %733 = vmatpush1.msra.mxu0 0.0
        %734 = vmatprep.subr.mxu0 0.0
        %735 = vmatpush1.msra.mxu0 0.0
        %736 = vmatprep.subr.mxu0 0.0
        %737 = vmatpush1.msra.mxu0 0.0
        %738 = vmatprep.subr.mxu0 0.0
        %739 = vmatpush1.msra.mxu0 0.0
        %740 = vmatprep.subr.mxu0 0.0
        %741 = vmatpush1.msra.mxu0 0.0
        %742 = vmatprep.subr.mxu0 0.0
        %743 = vmatpush1.msra.mxu0 0.0
        %744 = vmatprep.subr.mxu0 0.0
        %745 = vmatpush1.msra.mxu0 0.0
        %746 = vmatprep.subr.mxu0 0.0
        %747 = vmatpush1.msra.mxu0 0.0
        %748 = vmatprep.subr.mxu0 0.0
        %749 = vmatpush1.msra.mxu0 0.0
        %750 = vmatprep.subr.mxu0 0.0
        %751 = vmatpush1.msra.mxu0 0.0
        %752 = vmatprep.subr.mxu0 0.0
        %753 = vmatpush1.msra.mxu0 0.0
        %754 = vmatprep.subr.mxu0 0.0
        %755 = vmatpush1.msra.mxu0 0.0
        %756 = vmatprep.subr.mxu0 0.0
        %757 = vmatpush1.msra.mxu0 0.0
        %758 = vmatprep.subr.mxu0 0.0
        %759 = vmatpush1.msra.mxu0 0.0
        %760 = vmatprep.subr.mxu0 0.0
        %761 = vmatpush1.msra.mxu0 0.0
        %762 = vmatprep.subr.mxu0 0.0
        %763 = vmatpush1.msra.mxu0 0.0
        %764 = vmatprep.subr.mxu0 0.0
        %765 = vmatpush1.msra.mxu0 0.0
        %766 = vmatprep.subr.mxu0 0.0
        %767 = vmatpush1.msra.mxu0 0.0
        %768 = vmatprep.subr.mxu0 0.0
        %769 = vmatpush1.msra.mxu0 0.0
        %770 = vmatprep.subr.mxu0 0.0
        %771 = vmatpush1.msra.mxu0 0.0
        %772 = vmatprep.subr.mxu0 0.0
        %773 = vmatpush1.msra.mxu0 0.0
        %774 = vmatprep.subr.mxu0 0.0
        %775 = vmatpush1.msra.mxu0 0.0
        %776 = vmatprep.subr.mxu0 0.0
        %777 = vmatpush1.msra.mxu0 0.0
        %778 = vmatprep.subr.mxu0 0.0
        %779 = vmatpush1.msra.mxu0 0.0
        %780 = vmatprep.subr.mxu0 0.0
        %781 = vmatpush1.msra.mxu0 0.0
        %782 = vmatprep.mubr.f32.mxu0 0.0
        %783 = vmatmul.mubr.f32.gmra.mrb[0].mxu0 %v716
        %v784 = vpop.f32.mrb[0].mxu0
        %v785 = vadd.f32 0.0, %v784
        %v786 = vpop.f32.mrb[0].mxu0
        %787 = vdwg.mxu0
        %s788 = scalar_lea.vmem [#allocation7], 8
        %v789 = vld [vmem:[%s788] sm:$0xff]
        %v791 = vsel %vm386, %v785, 0
        %793 = vmatprep.subr.mxu0 0.0
        %794 = vmatpush1.msra.mxu0 %v789
        %795 = vmatprep.subr.mxu0 0.0
        %796 = vmatpush1.msra.mxu0 0.0
        %797 = vmatprep.subr.mxu0 0.0
        %798 = vmatpush1.msra.mxu0 0.0
        %799 = vmatprep.subr.mxu0 0.0
        %800 = vmatpush1.msra.mxu0 0.0
        %801 = vmatprep.subr.mxu0 0.0
        %802 = vmatpush1.msra.mxu0 0.0
        %803 = vmatprep.subr.mxu0 0.0
        %804 = vmatpush1.msra.mxu0 0.0
        %805 = vmatprep.subr.mxu0 0.0
        %806 = vmatpush1.msra.mxu0 0.0
        %807 = vmatprep.subr.mxu0 0.0
        %808 = vmatpush1.msra.mxu0 0.0
        %809 = vmatprep.subr.mxu0 0.0
        %810 = vmatpush1.msra.mxu0 0.0
        %811 = vmatprep.subr.mxu0 0.0
        %812 = vmatpush1.msra.mxu0 0.0
        %813 = vmatprep.subr.mxu0 0.0
        %814 = vmatpush1.msra.mxu0 0.0
        %815 = vmatprep.subr.mxu0 0.0
        %816 = vmatpush1.msra.mxu0 0.0
        %817 = vmatprep.subr.mxu0 0.0
        %818 = vmatpush1.msra.mxu0 0.0
        %819 = vmatprep.subr.mxu0 0.0
        %820 = vmatpush1.msra.mxu0 0.0
        %821 = vmatprep.subr.mxu0 0.0
        %822 = vmatpush1.msra.mxu0 0.0
        %823 = vmatprep.subr.mxu0 0.0
        %824 = vmatpush1.msra.mxu0 0.0
        %825 = vmatprep.subr.mxu0 0.0
        %826 = vmatpush1.msra.mxu0 0.0
        %827 = vmatprep.subr.mxu0 0.0
        %828 = vmatpush1.msra.mxu0 0.0
        %829 = vmatprep.subr.mxu0 0.0
        %830 = vmatpush1.msra.mxu0 0.0
        %831 = vmatprep.subr.mxu0 0.0
        %832 = vmatpush1.msra.mxu0 0.0
        %833 = vmatprep.subr.mxu0 0.0
        %834 = vmatpush1.msra.mxu0 0.0
        %835 = vmatprep.subr.mxu0 0.0
        %836 = vmatpush1.msra.mxu0 0.0
        %837 = vmatprep.subr.mxu0 0.0
        %838 = vmatpush1.msra.mxu0 0.0
        %839 = vmatprep.subr.mxu0 0.0
        %840 = vmatpush1.msra.mxu0 0.0
        %841 = vmatprep.subr.mxu0 0.0
        %842 = vmatpush1.msra.mxu0 0.0
        %843 = vmatprep.subr.mxu0 0.0
        %844 = vmatpush1.msra.mxu0 0.0
        %845 = vmatprep.subr.mxu0 0.0
        %846 = vmatpush1.msra.mxu0 0.0
        %847 = vmatprep.subr.mxu0 0.0
        %848 = vmatpush1.msra.mxu0 0.0
        %849 = vmatprep.subr.mxu0 0.0
        %850 = vmatpush1.msra.mxu0 0.0
        %851 = vmatprep.subr.mxu0 0.0
        %852 = vmatpush1.msra.mxu0 0.0
        %853 = vmatprep.subr.mxu0 0.0
        %854 = vmatpush1.msra.mxu0 0.0
        %855 = vmatprep.subr.mxu0 0.0
        %856 = vmatpush1.msra.mxu0 0.0
        %857 = vmatprep.mubr.f32.mxu0 0.0
        %858 = vmatmul.mubr.f32.gmra.mrb[0].mxu0 %v791
        %v859 = vpop.f32.mrb[0].mxu0
        %v860 = vadd.f32 0.0, %v859
        %v861 = vpop.f32.mrb[0].mxu0
        %862 = vdwg.mxu0
        %v863 = vadd.f32 %v622, %v860
        %864 = vrot.lane.b32.xlu0 %v380, 112
        %v865 = vpop.permute.xlu0 %864
        %866 = vrot.lane.b32.xlu0 %v380, 80
        %v867 = vpop.permute.xlu0 %866
        %v868 = vsel %vm386, %v865, 0
        %v870 = vsel %vm386, %v867, 0
        %872 = vmatprep.subr.mxu0 0.0
        %873 = vmatpush1.xpose.msra.mxu0 %v870
        %874 = vmatprep.subr.mxu0 0.0
        %875 = vmatpush1.xpose.msra.mxu0 0.0
        %876 = vmatprep.subr.mxu0 0.0
        %877 = vmatpush1.xpose.msra.mxu0 0.0
        %878 = vmatprep.subr.mxu0 0.0
        %879 = vmatpush1.xpose.msra.mxu0 0.0
        %880 = vmatprep.subr.mxu0 0.0
        %881 = vmatpush1.xpose.msra.mxu0 0.0
        %882 = vmatprep.subr.mxu0 0.0
        %883 = vmatpush1.xpose.msra.mxu0 0.0
        %884 = vmatprep.subr.mxu0 0.0
        %885 = vmatpush1.xpose.msra.mxu0 0.0
        %886 = vmatprep.subr.mxu0 0.0
        %887 = vmatpush1.xpose.msra.mxu0 0.0
        %888 = vmatprep.subr.mxu0 0.0
        %889 = vmatpush1.xpose.msra.mxu0 0.0
        %890 = vmatprep.subr.mxu0 0.0
        %891 = vmatpush1.xpose.msra.mxu0 0.0
        %892 = vmatprep.subr.mxu0 0.0
        %893 = vmatpush1.xpose.msra.mxu0 0.0
        %894 = vmatprep.subr.mxu0 0.0
        %895 = vmatpush1.xpose.msra.mxu0 0.0
        %896 = vmatprep.subr.mxu0 0.0
        %897 = vmatpush1.xpose.msra.mxu0 0.0
        %898 = vmatprep.subr.mxu0 0.0
        %899 = vmatpush1.xpose.msra.mxu0 0.0
        %900 = vmatprep.subr.mxu0 0.0
        %901 = vmatpush1.xpose.msra.mxu0 0.0
        %902 = vmatprep.subr.mxu0 0.0
        %903 = vmatpush1.xpose.msra.mxu0 0.0
        %904 = vmatprep.subr.mxu0 0.0
        %905 = vmatpush1.xpose.msra.mxu0 0.0
        %906 = vmatprep.subr.mxu0 0.0
        %907 = vmatpush1.xpose.msra.mxu0 0.0
        %908 = vmatprep.subr.mxu0 0.0
        %909 = vmatpush1.xpose.msra.mxu0 0.0
        %910 = vmatprep.subr.mxu0 0.0
        %911 = vmatpush1.xpose.msra.mxu0 0.0
        %912 = vmatprep.subr.mxu0 0.0
        %913 = vmatpush1.xpose.msra.mxu0 0.0
        %914 = vmatprep.subr.mxu0 0.0
        %915 = vmatpush1.xpose.msra.mxu0 0.0
        %916 = vmatprep.subr.mxu0 0.0
        %917 = vmatpush1.xpose.msra.mxu0 0.0
        %918 = vmatprep.subr.mxu0 0.0
        %919 = vmatpush1.xpose.msra.mxu0 0.0
        %920 = vmatprep.subr.mxu0 0.0
        %921 = vmatpush1.xpose.msra.mxu0 0.0
        %922 = vmatprep.subr.mxu0 0.0
        %923 = vmatpush1.xpose.msra.mxu0 0.0
        %924 = vmatprep.subr.mxu0 0.0
        %925 = vmatpush1.xpose.msra.mxu0 0.0
        %926 = vmatprep.subr.mxu0 0.0
        %927 = vmatpush1.xpose.msra.mxu0 0.0
        %928 = vmatprep.subr.mxu0 0.0
        %929 = vmatpush1.xpose.msra.mxu0 0.0
        %930 = vmatprep.subr.mxu0 0.0
        %931 = vmatpush1.xpose.msra.mxu0 0.0
        %932 = vmatprep.subr.mxu0 0.0
        %933 = vmatpush1.xpose.msra.mxu0 0.0
        %934 = vmatprep.subr.mxu0 0.0
        %935 = vmatpush1.xpose.msra.mxu0 0.0
        %936 = vmatprep.mubr.f32.mxu0 0.0
        %937 = vmatmul.mubr.f32.gmra.mrb[0].mxu0 %v868
        %v938 = vpop.f32.mrb[0].mxu0
        %v939 = vadd.f32 0.0, %v938
        %v940 = vpop.f32.mrb[0].mxu0
        %941 = vdwg.mxu0
        %v942 = vsel %vm386, %v939, -inf
        %943 = vmax.xlane.f32.xlu0 %v942
        %v944 = vpop.xlane.xlu0 %943
        %v945 = vsub.f32 %v939, %v944
        %v946 = vmul.f32 %v945, 1.442695
        %v947 = vpow.pop %v946
        %v948 = vsel %vm386, %v947, 0.0
        %949 = vadd.xlane.f32.xlu0 %v948
        %v950 = vpop.xlane.xlu0 %949
        %v951 = vrcp.pop %v950
        %v952 = vmul.f32 %v947, %v951
        %953 = vrot.lane.b32.xlu0 %v380, 48
        %v954 = vpop.permute.xlu0 %953
        %v957 = vsel %vm386, %v952, 0
        %959 = vmatprep.subr.mxu0 0.0
        %960 = vmatpush1.msra.mxu0 %v954
        %961 = vmatprep.subr.mxu0 0.0
        %962 = vmatpush1.msra.mxu0 0.0
        %963 = vmatprep.subr.mxu0 0.0
        %964 = vmatpush1.msra.mxu0 0.0
        %965 = vmatprep.subr.mxu0 0.0
        %966 = vmatpush1.msra.mxu0 0.0
        %967 = vmatprep.subr.mxu0 0.0
        %968 = vmatpush1.msra.mxu0 0.0
        %969 = vmatprep.subr.mxu0 0.0
        %970 = vmatpush1.msra.mxu0 0.0
        %971 = vmatprep.subr.mxu0 0.0
        %972 = vmatpush1.msra.mxu0 0.0
        %973 = vmatprep.subr.mxu0 0.0
        %974 = vmatpush1.msra.mxu0 0.0
        %975 = vmatprep.subr.mxu0 0.0
        %976 = vmatpush1.msra.mxu0 0.0
        %977 = vmatprep.subr.mxu0 0.0
        %978 = vmatpush1.msra.mxu0 0.0
        %979 = vmatprep.subr.mxu0 0.0
        %980 = vmatpush1.msra.mxu0 0.0
        %981 = vmatprep.subr.mxu0 0.0
        %982 = vmatpush1.msra.mxu0 0.0
        %983 = vmatprep.subr.mxu0 0.0
        %984 = vmatpush1.msra.mxu0 0.0
        %985 = vmatprep.subr.mxu0 0.0
        %986 = vmatpush1.msra.mxu0 0.0
        %987 = vmatprep.subr.mxu0 0.0
        %988 = vmatpush1.msra.mxu0 0.0
        %989 = vmatprep.subr.mxu0 0.0
        %990 = vmatpush1.msra.mxu0 0.0
        %991 = vmatprep.subr.mxu0 0.0
        %992 = vmatpush1.msra.mxu0 0.0
        %993 = vmatprep.subr.mxu0 0.0
        %994 = vmatpush1.msra.mxu0 0.0
        %995 = vmatprep.subr.mxu0 0.0
        %996 = vmatpush1.msra.mxu0 0.0
        %997 = vmatprep.subr.mxu0 0.0
        %998 = vmatpush1.msra.mxu0 0.0
        %999 = vmatprep.subr.mxu0 0.0
        %1000 = vmatpush1.msra.mxu0 0.0
        %1001 = vmatprep.subr.mxu0 0.0
        %1002 = vmatpush1.msra.mxu0 0.0
        %1003 = vmatprep.subr.mxu0 0.0
        %1004 = vmatpush1.msra.mxu0 0.0
        %1005 = vmatprep.subr.mxu0 0.0
        %1006 = vmatpush1.msra.mxu0 0.0
        %1007 = vmatprep.subr.mxu0 0.0
        %1008 = vmatpush1.msra.mxu0 0.0
        %1009 = vmatprep.subr.mxu0 0.0
        %1010 = vmatpush1.msra.mxu0 0.0
        %1011 = vmatprep.subr.mxu0 0.0
        %1012 = vmatpush1.msra.mxu0 0.0
        %1013 = vmatprep.subr.mxu0 0.0
        %1014 = vmatpush1.msra.mxu0 0.0
        %1015 = vmatprep.subr.mxu0 0.0
        %1016 = vmatpush1.msra.mxu0 0.0
        %1017 = vmatprep.subr.mxu0 0.0
        %1018 = vmatpush1.msra.mxu0 0.0
        %1019 = vmatprep.subr.mxu0 0.0
        %1020 = vmatpush1.msra.mxu0 0.0
        %1021 = vmatprep.subr.mxu0 0.0
        %1022 = vmatpush1.msra.mxu0 0.0
        %1023 = vmatprep.mubr.f32.mxu0 0.0
        %1024 = vmatmul.mubr.f32.gmra.mrb[0].mxu0 %v957
        %v1025 = vpop.f32.mrb[0].mxu0
        %v1026 = vadd.f32 0.0, %v1025
        %v1027 = vpop.f32.mrb[0].mxu0
        %1028 = vdwg.mxu0
        %s1029 = scalar_lea.vmem [#allocation7], 16
        %v1030 = vld [vmem:[%s1029] sm:$0xff]
        %v1032 = vsel %vm386, %v1026, 0
        %1034 = vmatprep.subr.mxu0 0.0
        %1035 = vmatpush1.msra.mxu0 %v1030
        %1036 = vmatprep.subr.mxu0 0.0
        %1037 = vmatpush1.msra.mxu0 0.0
        %1038 = vmatprep.subr.mxu0 0.0
        %1039 = vmatpush1.msra.mxu0 0.0
        %1040 = vmatprep.subr.mxu0 0.0
        %1041 = vmatpush1.msra.mxu0 0.0
        %1042 = vmatprep.subr.mxu0 0.0
        %1043 = vmatpush1.msra.mxu0 0.0
        %1044 = vmatprep.subr.mxu0 0.0
        %1045 = vmatpush1.msra.mxu0 0.0
        %1046 = vmatprep.subr.mxu0 0.0
        %1047 = vmatpush1.msra.mxu0 0.0
        %1048 = vmatprep.subr.mxu0 0.0
        %1049 = vmatpush1.msra.mxu0 0.0
        %1050 = vmatprep.subr.mxu0 0.0
        %1051 = vmatpush1.msra.mxu0 0.0
        %1052 = vmatprep.subr.mxu0 0.0
        %1053 = vmatpush1.msra.mxu0 0.0
        %1054 = vmatprep.subr.mxu0 0.0
        %1055 = vmatpush1.msra.mxu0 0.0
        %1056 = vmatprep.subr.mxu0 0.0
        %1057 = vmatpush1.msra.mxu0 0.0
        %1058 = vmatprep.subr.mxu0 0.0
        %1059 = vmatpush1.msra.mxu0 0.0
        %1060 = vmatprep.subr.mxu0 0.0
        %1061 = vmatpush1.msra.mxu0 0.0
        %1062 = vmatprep.subr.mxu0 0.0
        %1063 = vmatpush1.msra.mxu0 0.0
        %1064 = vmatprep.subr.mxu0 0.0
        %1065 = vmatpush1.msra.mxu0 0.0
        %1066 = vmatprep.subr.mxu0 0.0
        %1067 = vmatpush1.msra.mxu0 0.0
        %1068 = vmatprep.subr.mxu0 0.0
        %1069 = vmatpush1.msra.mxu0 0.0
        %1070 = vmatprep.subr.mxu0 0.0
        %1071 = vmatpush1.msra.mxu0 0.0
        %1072 = vmatprep.subr.mxu0 0.0
        %1073 = vmatpush1.msra.mxu0 0.0
        %1074 = vmatprep.subr.mxu0 0.0
        %1075 = vmatpush1.msra.mxu0 0.0
        %1076 = vmatprep.subr.mxu0 0.0
        %1077 = vmatpush1.msra.mxu0 0.0
        %1078 = vmatprep.subr.mxu0 0.0
        %1079 = vmatpush1.msra.mxu0 0.0
        %1080 = vmatprep.subr.mxu0 0.0
        %1081 = vmatpush1.msra.mxu0 0.0
        %1082 = vmatprep.subr.mxu0 0.0
        %1083 = vmatpush1.msra.mxu0 0.0
        %1084 = vmatprep.subr.mxu0 0.0
        %1085 = vmatpush1.msra.mxu0 0.0
        %1086 = vmatprep.subr.mxu0 0.0
        %1087 = vmatpush1.msra.mxu0 0.0
        %1088 = vmatprep.subr.mxu0 0.0
        %1089 = vmatpush1.msra.mxu0 0.0
        %1090 = vmatprep.subr.mxu0 0.0
        %1091 = vmatpush1.msra.mxu0 0.0
        %1092 = vmatprep.subr.mxu0 0.0
        %1093 = vmatpush1.msra.mxu0 0.0
        %1094 = vmatprep.subr.mxu0 0.0
        %1095 = vmatpush1.msra.mxu0 0.0
        %1096 = vmatprep.subr.mxu0 0.0
        %1097 = vmatpush1.msra.mxu0 0.0
        %1098 = vmatprep.mubr.f32.mxu0 0.0
        %1099 = vmatmul.mubr.f32.gmra.mrb[0].mxu0 %v1032
        %v1100 = vpop.f32.mrb[0].mxu0
        %v1101 = vadd.f32 0.0, %v1100
        %v1102 = vpop.f32.mrb[0].mxu0
        %1103 = vdwg.mxu0
        %v1104 = vadd.f32 %v863, %v1101
        %1105 = vrot.lane.b32.xlu0 %v380, 104
        %v1106 = vpop.permute.xlu0 %1105
        %1107 = vrot.lane.b32.xlu0 %v380, 72
        %v1108 = vpop.permute.xlu0 %1107
        %v1109 = vsel %vm386, %v1106, 0
        %v1111 = vsel %vm386, %v1108, 0
        %1113 = vmatprep.subr.mxu0 0.0
        %1114 = vmatpush1.xpose.msra.mxu0 %v1111
        %1115 = vmatprep.subr.mxu0 0.0
        %1116 = vmatpush1.xpose.msra.mxu0 0.0
        %1117 = vmatprep.subr.mxu0 0.0
        %1118 = vmatpush1.xpose.msra.mxu0 0.0
        %1119 = vmatprep.subr.mxu0 0.0
        %1120 = vmatpush1.xpose.msra.mxu0 0.0
        %1121 = vmatprep.subr.mxu0 0.0
        %1122 = vmatpush1.xpose.msra.mxu0 0.0
        %1123 = vmatprep.subr.mxu0 0.0
        %1124 = vmatpush1.xpose.msra.mxu0 0.0
        %1125 = vmatprep.subr.mxu0 0.0
        %1126 = vmatpush1.xpose.msra.mxu0 0.0
        %1127 = vmatprep.subr.mxu0 0.0
        %1128 = vmatpush1.xpose.msra.mxu0 0.0
        %1129 = vmatprep.subr.mxu0 0.0
        %1130 = vmatpush1.xpose.msra.mxu0 0.0
        %1131 = vmatprep.subr.mxu0 0.0
        %1132 = vmatpush1.xpose.msra.mxu0 0.0
        %1133 = vmatprep.subr.mxu0 0.0
        %1134 = vmatpush1.xpose.msra.mxu0 0.0
        %1135 = vmatprep.subr.mxu0 0.0
        %1136 = vmatpush1.xpose.msra.mxu0 0.0
        %1137 = vmatprep.subr.mxu0 0.0
        %1138 = vmatpush1.xpose.msra.mxu0 0.0
        %1139 = vmatprep.subr.mxu0 0.0
        %1140 = vmatpush1.xpose.msra.mxu0 0.0
        %1141 = vmatprep.subr.mxu0 0.0
        %1142 = vmatpush1.xpose.msra.mxu0 0.0
        %1143 = vmatprep.subr.mxu0 0.0
        %1144 = vmatpush1.xpose.msra.mxu0 0.0
        %1145 = vmatprep.subr.mxu0 0.0
        %1146 = vmatpush1.xpose.msra.mxu0 0.0
        %1147 = vmatprep.subr.mxu0 0.0
        %1148 = vmatpush1.xpose.msra.mxu0 0.0
        %1149 = vmatprep.subr.mxu0 0.0
        %1150 = vmatpush1.xpose.msra.mxu0 0.0
        %1151 = vmatprep.subr.mxu0 0.0
        %1152 = vmatpush1.xpose.msra.mxu0 0.0
        %1153 = vmatprep.subr.mxu0 0.0
        %1154 = vmatpush1.xpose.msra.mxu0 0.0
        %1155 = vmatprep.subr.mxu0 0.0
        %1156 = vmatpush1.xpose.msra.mxu0 0.0
        %1157 = vmatprep.subr.mxu0 0.0
        %1158 = vmatpush1.xpose.msra.mxu0 0.0
        %1159 = vmatprep.subr.mxu0 0.0
        %1160 = vmatpush1.xpose.msra.mxu0 0.0
        %1161 = vmatprep.subr.mxu0 0.0
        %1162 = vmatpush1.xpose.msra.mxu0 0.0
        %1163 = vmatprep.subr.mxu0 0.0
        %1164 = vmatpush1.xpose.msra.mxu0 0.0
        %1165 = vmatprep.subr.mxu0 0.0
        %1166 = vmatpush1.xpose.msra.mxu0 0.0
        %1167 = vmatprep.subr.mxu0 0.0
        %1168 = vmatpush1.xpose.msra.mxu0 0.0
        %1169 = vmatprep.subr.mxu0 0.0
        %1170 = vmatpush1.xpose.msra.mxu0 0.0
        %1171 = vmatprep.subr.mxu0 0.0
        %1172 = vmatpush1.xpose.msra.mxu0 0.0
        %1173 = vmatprep.subr.mxu0 0.0
        %1174 = vmatpush1.xpose.msra.mxu0 0.0
        %1175 = vmatprep.subr.mxu0 0.0
        %1176 = vmatpush1.xpose.msra.mxu0 0.0
        %1177 = vmatprep.mubr.f32.mxu0 0.0
        %1178 = vmatmul.mubr.f32.gmra.mrb[0].mxu0 %v1109
        %v1179 = vpop.f32.mrb[0].mxu0
        %v1180 = vadd.f32 0.0, %v1179
        %v1181 = vpop.f32.mrb[0].mxu0
        %1182 = vdwg.mxu0
        %v1183 = vsel %vm386, %v1180, -inf
        %1184 = vmax.xlane.f32.xlu0 %v1183
        %v1185 = vpop.xlane.xlu0 %1184
        %v1186 = vsub.f32 %v1180, %v1185
        %v1187 = vmul.f32 %v1186, 1.442695
        %v1188 = vpow.pop %v1187
        %v1189 = vsel %vm386, %v1188, 0.0
        %1190 = vadd.xlane.f32.xlu0 %v1189
        %v1191 = vpop.xlane.xlu0 %1190
        %v1192 = vrcp.pop %v1191
        %v1193 = vmul.f32 %v1188, %v1192
        %1194 = vrot.lane.b32.xlu0 %v380, 40
        %v1195 = vpop.permute.xlu0 %1194
        %v1198 = vsel %vm386, %v1193, 0
        %1200 = vmatprep.subr.mxu0 0.0
        %1201 = vmatpush1.msra.mxu0 %v1195
        %1202 = vmatprep.subr.mxu0 0.0
        %1203 = vmatpush1.msra.mxu0 0.0
        %1204 = vmatprep.subr.mxu0 0.0
        %1205 = vmatpush1.msra.mxu0 0.0
        %1206 = vmatprep.subr.mxu0 0.0
        %1207 = vmatpush1.msra.mxu0 0.0
        %1208 = vmatprep.subr.mxu0 0.0
        %1209 = vmatpush1.msra.mxu0 0.0
        %1210 = vmatprep.subr.mxu0 0.0
        %1211 = vmatpush1.msra.mxu0 0.0
        %1212 = vmatprep.subr.mxu0 0.0
        %1213 = vmatpush1.msra.mxu0 0.0
        %1214 = vmatprep.subr.mxu0 0.0
        %1215 = vmatpush1.msra.mxu0 0.0
        %1216 = vmatprep.subr.mxu0 0.0
        %1217 = vmatpush1.msra.mxu0 0.0
        %1218 = vmatprep.subr.mxu0 0.0
        %1219 = vmatpush1.msra.mxu0 0.0
        %1220 = vmatprep.subr.mxu0 0.0
        %1221 = vmatpush1.msra.mxu0 0.0
        %1222 = vmatprep.subr.mxu0 0.0
        %1223 = vmatpush1.msra.mxu0 0.0
        %1224 = vmatprep.subr.mxu0 0.0
        %1225 = vmatpush1.msra.mxu0 0.0
        %1226 = vmatprep.subr.mxu0 0.0
        %1227 = vmatpush1.msra.mxu0 0.0
        %1228 = vmatprep.subr.mxu0 0.0
        %1229 = vmatpush1.msra.mxu0 0.0
        %1230 = vmatprep.subr.mxu0 0.0
        %1231 = vmatpush1.msra.mxu0 0.0
        %1232 = vmatprep.subr.mxu0 0.0
        %1233 = vmatpush1.msra.mxu0 0.0
        %1234 = vmatprep.subr.mxu0 0.0
        %1235 = vmatpush1.msra.mxu0 0.0
        %1236 = vmatprep.subr.mxu0 0.0
        %1237 = vmatpush1.msra.mxu0 0.0
        %1238 = vmatprep.subr.mxu0 0.0
        %1239 = vmatpush1.msra.mxu0 0.0
        %1240 = vmatprep.subr.mxu0 0.0
        %1241 = vmatpush1.msra.mxu0 0.0
        %1242 = vmatprep.subr.mxu0 0.0
        %1243 = vmatpush1.msra.mxu0 0.0
        %1244 = vmatprep.subr.mxu0 0.0
        %1245 = vmatpush1.msra.mxu0 0.0
        %1246 = vmatprep.subr.mxu0 0.0
        %1247 = vmatpush1.msra.mxu0 0.0
        %1248 = vmatprep.subr.mxu0 0.0
        %1249 = vmatpush1.msra.mxu0 0.0
        %1250 = vmatprep.subr.mxu0 0.0
        %1251 = vmatpush1.msra.mxu0 0.0
        %1252 = vmatprep.subr.mxu0 0.0
        %1253 = vmatpush1.msra.mxu0 0.0
        %1254 = vmatprep.subr.mxu0 0.0
        %1255 = vmatpush1.msra.mxu0 0.0
        %1256 = vmatprep.subr.mxu0 0.0
        %1257 = vmatpush1.msra.mxu0 0.0
        %1258 = vmatprep.subr.mxu0 0.0
        %1259 = vmatpush1.msra.mxu0 0.0
        %1260 = vmatprep.subr.mxu0 0.0
        %1261 = vmatpush1.msra.mxu0 0.0
        %1262 = vmatprep.subr.mxu0 0.0
        %1263 = vmatpush1.msra.mxu0 0.0
        %1264 = vmatprep.mubr.f32.mxu0 0.0
        %1265 = vmatmul.mubr.f32.gmra.mrb[0].mxu0 %v1198
        %v1266 = vpop.f32.mrb[0].mxu0
        %v1267 = vadd.f32 0.0, %v1266
        %v1268 = vpop.f32.mrb[0].mxu0
        %1269 = vdwg.mxu0
        %s1270 = scalar_lea.vmem [#allocation7], 24
        %v1271 = vld [vmem:[%s1270] sm:$0xff]
        %v1273 = vsel %vm386, %v1267, 0
        %1275 = vmatprep.subr.mxu0 0.0
        %1276 = vmatpush1.msra.mxu0 %v1271
        %1277 = vmatprep.subr.mxu0 0.0
        %1278 = vmatpush1.msra.mxu0 0.0
        %1279 = vmatprep.subr.mxu0 0.0
        %1280 = vmatpush1.msra.mxu0 0.0
        %1281 = vmatprep.subr.mxu0 0.0
        %1282 = vmatpush1.msra.mxu0 0.0
        %1283 = vmatprep.subr.mxu0 0.0
        %1284 = vmatpush1.msra.mxu0 0.0
        %1285 = vmatprep.subr.mxu0 0.0
        %1286 = vmatpush1.msra.mxu0 0.0
        %1287 = vmatprep.subr.mxu0 0.0
        %1288 = vmatpush1.msra.mxu0 0.0
        %1289 = vmatprep.subr.mxu0 0.0
        %1290 = vmatpush1.msra.mxu0 0.0
        %1291 = vmatprep.subr.mxu0 0.0
        %1292 = vmatpush1.msra.mxu0 0.0
        %1293 = vmatprep.subr.mxu0 0.0
        %1294 = vmatpush1.msra.mxu0 0.0
        %1295 = vmatprep.subr.mxu0 0.0
        %1296 = vmatpush1.msra.mxu0 0.0
        %1297 = vmatprep.subr.mxu0 0.0
        %1298 = vmatpush1.msra.mxu0 0.0
        %1299 = vmatprep.subr.mxu0 0.0
        %1300 = vmatpush1.msra.mxu0 0.0
        %1301 = vmatprep.subr.mxu0 0.0
        %1302 = vmatpush1.msra.mxu0 0.0
        %1303 = vmatprep.subr.mxu0 0.0
        %1304 = vmatpush1.msra.mxu0 0.0
        %1305 = vmatprep.subr.mxu0 0.0
        %1306 = vmatpush1.msra.mxu0 0.0
        %1307 = vmatprep.subr.mxu0 0.0
        %1308 = vmatpush1.msra.mxu0 0.0
        %1309 = vmatprep.subr.mxu0 0.0
        %1310 = vmatpush1.msra.mxu0 0.0
        %1311 = vmatprep.subr.mxu0 0.0
        %1312 = vmatpush1.msra.mxu0 0.0
        %1313 = vmatprep.subr.mxu0 0.0
        %1314 = vmatpush1.msra.mxu0 0.0
        %1315 = vmatprep.subr.mxu0 0.0
        %1316 = vmatpush1.msra.mxu0 0.0
        %1317 = vmatprep.subr.mxu0 0.0
        %1318 = vmatpush1.msra.mxu0 0.0
        %1319 = vmatprep.subr.mxu0 0.0
        %1320 = vmatpush1.msra.mxu0 0.0
        %1321 = vmatprep.subr.mxu0 0.0
        %1322 = vmatpush1.msra.mxu0 0.0
        %1323 = vmatprep.subr.mxu0 0.0
        %1324 = vmatpush1.msra.mxu0 0.0
        %1325 = vmatprep.subr.mxu0 0.0
        %1326 = vmatpush1.msra.mxu0 0.0
        %1327 = vmatprep.subr.mxu0 0.0
        %1328 = vmatpush1.msra.mxu0 0.0
        %1329 = vmatprep.subr.mxu0 0.0
        %1330 = vmatpush1.msra.mxu0 0.0
        %1331 = vmatprep.subr.mxu0 0.0
        %1332 = vmatpush1.msra.mxu0 0.0
        %1333 = vmatprep.subr.mxu0 0.0
        %1334 = vmatpush1.msra.mxu0 0.0
        %1335 = vmatprep.subr.mxu0 0.0
        %1336 = vmatpush1.msra.mxu0 0.0
        %1337 = vmatprep.subr.mxu0 0.0
        %1338 = vmatpush1.msra.mxu0 0.0
        %1339 = vmatprep.mubr.f32.mxu0 0.0
        %1340 = vmatmul.mubr.f32.gmra.mrb[0].mxu0 %v1273
        %v1341 = vpop.f32.mrb[0].mxu0
        %v1342 = vadd.f32 0.0, %v1341
        %v1343 = vpop.f32.mrb[0].mxu0
        %1344 = vdwg.mxu0
        %v1345 = vadd.f32 %v1104, %v1342
        %v1346 = vld [vmem:[%s3] sm:$0x1]
        %v1348 = vlaneseq
        %v1349 = vshrl.u32 %v1348, 7
        %v1350 = vsub.s32 0, %v1349
        %v1351 = vrot.slane %v1346, %v1350
        %v1353 = vadd.f32 %v1345, %v1351
        %v1354 = vadd.f32 %v1353, %v296
        %vm1355 = vcmask 261120
        %v1356 = vsel %vm1355, %v1354, 0.0
        %1357 = vadd.xlane.f32.xlu0 %v1356
        %v1358 = vpop.xlane.xlu0 %1357
        %v1359 = vrcp.pop 32.0
        %v1360 = vmul.f32 %v1358, %v1359
        %v1361 = vsub.f32 %v1354, %v1360
        %v1362 = vmul.f32 %v1361, %v1361
        %v1363 = vsel %vm1355, %v1362, 0.0
        %1364 = vadd.xlane.f32.xlu0 %v1363
        %v1365 = vpop.xlane.xlu0 %1364
        %v1366 = vmul.f32 %v1365, %v1359
        %v1367 = vadd.f32 %v1366, 1e-05
        %v1368 = vrsqrt.pop %v1367
        %v1369 = vmul.f32 %v1361, %v1368
        %v1370 = vld [vmem:[%s4] sm:$0x1]
        %v1372 = vlaneseq
        %v1373 = vshrl.u32 %v1372, 7
        %v1374 = vsub.s32 0, %v1373
        %v1375 = vrot.slane %v1370, %v1374
        %v1377 = vmul.f32 %v1369, %v1375
        %v1378 = vld [vmem:[%s5] sm:$0x1]
        %v1380 = vlaneseq
        %v1381 = vshrl.u32 %v1380, 7
        %v1382 = vsub.s32 0, %v1381
        %v1383 = vrot.slane %v1378, %v1382
        %v1385 = vadd.f32 %v1377, %v1383
        %1386 = vst.msk [vmem:[%s295] sm:$0xff] %vm1355, %v1385
        %s1387 = sand.u32 %s163, 1
        %s1388 = scalar_lea.sflag [#allocation4], %s1387
        %s1389 = sand.u32 %s163, 1
        %s1390 = smul.addr %s1389, 8
        %s1391 = scalar_lea.vmem [#allocation8], %s1390
        // Predicated region
        $region57: #{tpu_custom_call.1} parent=43 // pred_check
          %p1392 = pneg %p173
        $region58: #{tpu_custom_call.1} parent=43 // pred_check_branch
          %1394 = sbr.rel (%p1392) target = $region60
        $region59: #{tpu_custom_call.1} parent=43 // pred_region
          %s1396 = ssub.s32 128, 128
          %1397 = vsyncadd %s1388, %s1396
          %s1398 = smul.addr %s24, 128
          %s1399 = scalar_lea.hbm %s6, %s1398
          %s1401 = sshll.u32 %s1391, 4
          %s1402 = int_to_ptr.vmem [resolvable:$true] %s1401
          %1404 = dma.vmem_to_hbm [thread:$0]  %s1402, 128, %s1399, %s1388
        $region60: #{tpu_custom_call.1} parent=43 // pred_fallthru
          _
      $region44: #{tpu_custom_call.1} parent=5 // pred_fallthru
        _
      %p1405 = scmp.le.s32.totalorder 2, %s19
      // Predicated region
      $region61: #{tpu_custom_call.1} parent=5 // pred_check
        %p1406 = pneg %p1405
      $region62: #{tpu_custom_call.1} parent=5 // pred_check_branch
        %1408 = sbr.rel (%p1406) target = $region64
      $region63: #{tpu_custom_call.1} parent=5 // pred_region
        %s1409 = ssub.s32 %s19, 2
        // Predicated region
        $region65: #{tpu_custom_call.1} parent=63 // pred_check
          %p1410 = pneg %p179
        $region66: #{tpu_custom_call.1} parent=63 // pred_check_branch
          %1412 = sbr.rel (%p1410) target = $region68
        $region67: #{tpu_custom_call.1} parent=63 // pred_region
          %s1413 = sand.u32 %s164, 1
          %s1414 = scalar_lea.sflag [#allocation4], %s1413
          %s1415 = sand.u32 %s164, 1
          %s1416 = smul.addr %s1415, 8
          %s1417 = scalar_lea.vmem [#allocation8], %s1416
          %1418 = dma.done %s1414, 128
        $region68: #{tpu_custom_call.1} parent=63 // pred_fallthru
          _
      $region64: #{tpu_custom_call.1} parent=5 // pred_fallthru
        _
    $region6: #{tpu_custom_call.1} parent=1 // loop_footer
      %s23 = sadd.s32 1, %s19
    $region7: #{tpu_custom_call.1} parent=1 // loop_footer_branch
      %18 = sbr.rel target = $region3
    $region8: #{tpu_custom_call.1} parent=1 // loop_exit
      _
    %1419 = vsyncpa [#allocation3], 1
    %s1420 = scalar_lea.sflag [#allocation3], 1
    %1421 = vsyncpa %s1420, 1
    %1422 = vsyncpa [#allocation6], 1
    %1423 = vsyncpa [#allocation4], 1
    %s1424 = scalar_lea.sflag [#allocation4], 1
    %1425 = vsyncpa %s1424, 1

</llo_original>
